<compile_context>
chip_gen: v7x
topology: tpu7x:2x2x1
jax: 0.10.0
libtpu: 0.0.40
codegen_flags: <defaults>
</compile_context>

<pallas_src>
import functools

import jax
import jax.numpy as jnp
from jax.experimental import pallas as pl
from jax.experimental.pallas import tpu as pltpu


# ----------------------------------------------------------------------------
# helpers
# ----------------------------------------------------------------------------
def _round_up(x, m):
    return (x + m - 1) // m * m


def _m_tile(m):
    """M (rows = N*H*W) tile: cap at 256 so big inputs never blow VMEM."""
    tm = min(256, _round_up(m, 8))
    return tm, _round_up(m, tm)


def _kn_tiles(k, n):
    """Adaptive K / N tiles: never pad small K/Cout up to a huge fixed tile."""
    tk = min(512, _round_up(k, 128))
    tn = min(256, _round_up(n, 128))
    return tk, tn, _round_up(k, tk), _round_up(n, tn)


# ----------------------------------------------------------------------------
# Pallas kernel 1: tiled bf16 matmul, f32 accumulation (conv hot path)
# ----------------------------------------------------------------------------
def _matmul_kernel(a_ref, b_ref, o_ref, acc_ref):
    k = pl.program_id(2)

    @pl.when(k == 0)
    def _():
        acc_ref[...] = jnp.zeros_like(acc_ref)

    acc_ref[...] += jnp.dot(a_ref[...], b_ref[...],
                            preferred_element_type=jnp.float32)

    @pl.when(k == pl.num_programs(2) - 1)
    def _():
        o_ref[...] = acc_ref[...]


def pallas_matmul(a_p, b_p, tm, tk, tn):
    """a_p: (Mp, Kp) bf16, b_p: (Kp, Np) bf16 -> (Mp, Np) f32."""
    Mp, Kp = a_p.shape
    _, Np = b_p.shape
    grid = (Mp // tm, Np // tn, Kp // tk)
    return pl.pallas_call(
        _matmul_kernel,
        out_shape=jax.ShapeDtypeStruct((Mp, Np), jnp.float32),
        grid_spec=pltpu.PrefetchScalarGridSpec(
            num_scalar_prefetch=0,
            grid=grid,
            in_specs=[pl.BlockSpec((tm, tk), lambda i, j, k: (i, k)),
                      pl.BlockSpec((tk, tn), lambda i, j, k: (k, j))],
            out_specs=pl.BlockSpec((tm, tn), lambda i, j, k: (i, j)),
            scratch_shapes=[pltpu.VMEM((tm, tn), jnp.float32)]),
        compiler_params=pltpu.CompilerParams(
            dimension_semantics=("parallel", "parallel", "arbitrary")),
    )(a_p, b_p)


# ----------------------------------------------------------------------------
# Pallas kernel 2: InstanceNorm (+affine) with fused ReLU or fused residual add
# ----------------------------------------------------------------------------
def _inorm_math(x, g, b, *, eps, relu):
    # PyTorch InstanceNorm2d: per-(sample, channel) mean/var over H*W, biased var.
    mean = jnp.mean(x, axis=1, keepdims=True)
    xc = x - mean
    var = jnp.mean(xc * xc, axis=1, keepdims=True)
    y = xc * jax.lax.rsqrt(var + eps)
    y = y * g + b
    if relu:
        y = jnp.maximum(y, 0.0)
    return y


def _inorm_kernel(x_ref, g_ref, b_ref, o_ref, *, eps, relu):
    o_ref[...] = _inorm_math(x_ref[...], g_ref[...], b_ref[...],
                             eps=eps, relu=relu)


def _inorm_res_kernel(x_ref, g_ref, b_ref, res_ref, o_ref, *, eps):
    y = _inorm_math(x_ref[...], g_ref[...], b_ref[...], eps=eps, relu=False)
    o_ref[...] = y + res_ref[...]          # fused residual add (x + main(x))


def pallas_instance_norm(x, gamma, beta, *, relu, residual=None, eps=1e-5):
    """x: (N, HW, Cp) f32 with Cp % 128 == 0.  Grid over (sample, channel tile)."""
    n, hw, cp = x.shape
    assert cp % 128 == 0
    tc = 128
    g2 = gamma.reshape(1, 1, cp)
    b2 = beta.reshape(1, 1, cp)

    # TODO(synk): single-pass over the full HW extent per block; a two-pass
    #   (stats then normalize) tiling would be needed for very large H*W.
    x_spec = pl.BlockSpec((1, hw, tc), lambda i, c: (i, 0, c))
    gb_spec = pl.BlockSpec((1, 1, tc), lambda i, c: (0, 0, c))
    in_specs = [x_spec, gb_spec, gb_spec]
    args = [x, g2, b2]
    if residual is None:
        kernel = functools.partial(_inorm_kernel, eps=eps, relu=relu)
    else:
        kernel = functools.partial(_inorm_res_kernel, eps=eps)
        in_specs.append(x_spec)
        args.append(residual)

    return pl.pallas_call(
        kernel,
        out_shape=jax.ShapeDtypeStruct((n, hw, cp), jnp.float32),
        grid_spec=pltpu.PrefetchScalarGridSpec(
            num_scalar_prefetch=0,
            grid=(n, cp // tc),
            in_specs=in_specs,
            out_specs=x_spec),
        compiler_params=pltpu.CompilerParams(
            dimension_semantics=("parallel", "parallel")),
    )(*args)


# ----------------------------------------------------------------------------
# 3x3 / stride 1 / pad 1 conv (bias=False) built on the Pallas matmul
# ----------------------------------------------------------------------------
def conv3x3_matmul(x_nhwc, w_p, k_real, tk, tn, tm, mp):
    """x_nhwc: (N, H, W, Cin) f32.  w_p: pre-packed (Kp, Np) bf16 weight.
    Returns (N, H*W, Np) f32 (channels padded to the lane tile)."""
    n, h, w, c = x_nhwc.shape
    m = n * h * w
    xp = jnp.pad(x_nhwc, ((0, 0), (1, 1), (1, 1), (0, 0)))
    # TODO(synk): im2col patches are still materialized in HBM (9x read
    #   amplification); fusing the tap expansion into the matmul grid via
    #   shifted-window index_maps would remove this round trip.
    cols = [xp[:, i:i + h, j:j + w, :] for i in range(3) for j in range(3)]
    patches = jnp.stack(cols, axis=3).reshape(m, 9 * c).astype(jnp.bfloat16)
    kp, np_ = w_p.shape
    a = jnp.zeros((mp, kp), jnp.bfloat16).at[:m, :k_real].set(patches)
    out = pallas_matmul(a, w_p, tm, tk, tn)          # (Mp, Np) f32
    return out[:m].reshape(n, h * w, np_)


# ----------------------------------------------------------------------------
# ResidualBlock: params (pre-packed once at init) + forward
# ----------------------------------------------------------------------------
def make_residual_block(key, dim_in, dim_out, net_mode=None):
    """Returns (params, forward).  forward(params, x_nchw) -> NCHW f32."""
    assert dim_in == dim_out, "x + main(x) requires dim_in == dim_out"
    # net_mode 'p'/None -> affine InstanceNorm; 't' -> no affine.  At init both
    # are numerically identical (gamma=1, beta=0), so one code path suffices.
    del net_mode
    k1, k2 = jax.random.split(key)

    def he_conv(k, cin, cout):
        w = jax.random.normal(k, (cout, cin, 3, 3), jnp.float32)
        return w * jnp.sqrt(2.0 / (cin * 9))

    w1 = he_conv(k1, dim_in, dim_out)
    w2 = he_conv(k2, dim_out, dim_out)

    def pack_w(w):
        # Weights reshaped/padded/cast to bf16 ONCE here, not per forward call.
        cout, cin, kh, kw = w.shape
        k = cin * kh * kw
        tk, tn, kp, np_ = _kn_tiles(k, cout)
        w2d = jnp.transpose(w, (2, 3, 1, 0)).reshape(k, cout)   # tap-major K
        w_p = jnp.zeros((kp, np_), jnp.bfloat16).at[:k, :cout].set(
            w2d.astype(jnp.bfloat16))
        return w_p, (k, tk, tn, np_)

    w1_p, (k1_real, tk1, tn1, np1) = pack_w(w1)
    w2_p, (k2_real, tk2, tn2, np2) = pack_w(w2)

    def pack_gb(np_):
        return (jnp.ones((np_,), jnp.float32),     # InstanceNorm weight init
                jnp.zeros((np_,), jnp.float32))    # InstanceNorm bias init

    g1, b1 = pack_gb(np1)
    g2, b2 = pack_gb(np2)

    params = {"w1_p": w1_p, "w2_p": w2_p,
              "g1": g1, "b1": b1, "g2": g2, "b2": b2,
              # raw f32 conv weights kept only for the reference check
              "w1": w1, "w2": w2}

    def forward(p, x):
        n, c, h, w = x.shape
        assert c == dim_in
        x_nhwc = jnp.transpose(x, (0, 2, 3, 1))            # NHWC internally
        m = n * h * w
        tm, mp = _m_tile(m)

        # conv1 -> InstanceNorm + ReLU (fused epilogue kernel)
        h1 = conv3x3_matmul(x_nhwc, p["w1_p"], k1_real, tk1, tn1, tm, mp)
        h1 = pallas_instance_norm(h1, p["g1"], p["b1"], relu=True)

        # conv2 -> InstanceNorm with the residual add fused into the epilogue
        h1_real = h1[:, :, :dim_out].reshape(n, h, w, dim_out)
        h2 = conv3x3_matmul(h1_real, p["w2_p"], k2_real, tk2, tn2, tm, mp)
        res = jnp.zeros((n, h * w, np2), jnp.float32).at[:, :, :dim_in].set(
            x_nhwc.reshape(n, h * w, dim_in))
        out = pallas_instance_norm(h2, p["g2"], p["b2"], relu=False, residual=res)

        out = out[:, :, :dim_out].reshape(n, h, w, dim_out)
        return jnp.transpose(out, (0, 3, 1, 2))            # back to NCHW

    return params, forward


# ----------------------------------------------------------------------------
if __name__ == "__main__":
    key = jax.random.PRNGKey(0)
    pkey, xkey = jax.random.split(key)

    DIM = 32                                           # dim_in == dim_out
    params, forward = make_residual_block(pkey, DIM, DIM, net_mode="p")
    x = jax.random.normal(xkey, (2, DIM, 16, 16), jnp.float32)   # NCHW

    fwd = jax.jit(forward)
    out = jax.block_until_ready(fwd(params, x))
    assert out.shape == x.shape, out.shape

    # Pure-JAX f32 reference of the same forward for a sanity check.
    def ref_forward(p, x):
        def conv(x, w):
            return jax.lax.conv_general_dilated(
                x, w, (1, 1), ((1, 1), (1, 1)),
                dimension_numbers=("NCHW", "OIHW", "NCHW"),
                precision=jax.lax.Precision.HIGHEST)

        def inorm(x, relu):
            mean = jnp.mean(x, axis=(2, 3), keepdims=True)
            var = jnp.mean((x - mean) ** 2, axis=(2, 3), keepdims=True)
            y = (x - mean) * jax.lax.rsqrt(var + 1e-5)   # gamma=1, beta=0 at init
            return jnp.maximum(y, 0.0) if relu else y

        h = inorm(conv(x, p["w1"]), relu=True)
        h = inorm(conv(h, p["w2"]), relu=False)
        return x + h

    ref = jax.block_until_ready(ref_forward(params, x))
    max_err = float(jnp.max(jnp.abs(out - ref)))
    assert max_err < 1e-1, max_err                     # bf16-matmul tolerance
    assert bool(jnp.all(jnp.isfinite(out)))
    print("KERNEL_OK")
</pallas_src>

<mosaic_0001>
module attributes {stable_mosaic.version = 11 : i64} {
  func.func @_matmul_kernel(%arg0: i32, %arg1: i32, %arg2: i32, %arg3: memref<256x384xbf16, #tpu.memory_space<vmem>>, %arg4: memref<384x128xbf16, #tpu.memory_space<vmem>>, %arg5: memref<256x128xf32, #tpu.memory_space<vmem>>, %arg6: memref<256x128xf32, #tpu.memory_space<vmem>>) attributes {dimension_semantics = [#tpu.dimension_semantics<parallel>, #tpu.dimension_semantics<parallel>, #tpu.dimension_semantics<arbitrary>], iteration_bounds = array<i64: 2, 1, 1>, scalar_prefetch = 0 : i64, scratch_operands = 1 : i64, tpu.core_type = #tpu.core_type<tc>, window_params = [{transform_indices = @transform_0, window_bounds = array<i64: 256, 384>}, {transform_indices = @transform_1, window_bounds = array<i64: 384, 128>}, {transform_indices = @transform_2, window_bounds = array<i64: 256, 128>}]} {
    %c0_i32 = arith.constant 0 : i32
    %0 = arith.cmpi eq, %arg2, %c0_i32 : i32
    %1 = arith.extui %0 : i1 to i32
    %c0_i32_0 = arith.constant 0 : i32
    %2 = arith.cmpi ne, %1, %c0_i32_0 : i32
    scf.if %2 {
      %cst_10 = arith.constant 0.000000e+00 : f32
      %12 = vector.broadcast %cst_10 : f32 to vector<256x128xf32>
      %c0_11 = arith.constant 0 : index
      %c0_12 = arith.constant 0 : index
      %13 = vector.load %arg6[%c0_11, %c0_12] : memref<256x128xf32, #tpu.memory_space<vmem>>, vector<256x128xf32>
      tpu.vector_store %arg6[%c0_11, %c0_12], %12 {strides = array<i32>} : memref<256x128xf32, #tpu.memory_space<vmem>>, vector<256x128xf32>,
    } else {
    }
    %c0 = arith.constant 0 : index
    %c0_1 = arith.constant 0 : index
    %3 = vector.load %arg6[%c0, %c0_1] : memref<256x128xf32, #tpu.memory_space<vmem>>, vector<256x128xf32>
    %c0_2 = arith.constant 0 : index
    %c0_3 = arith.constant 0 : index
    %4 = vector.load %arg3[%c0_2, %c0_3] : memref<256x384xbf16, #tpu.memory_space<vmem>>, vector<256x384xbf16>
    %c0_4 = arith.constant 0 : index
    %c0_5 = arith.constant 0 : index
    %5 = vector.load %arg4[%c0_4, %c0_5] : memref<384x128xbf16, #tpu.memory_space<vmem>>, vector<384x128xbf16>
    %cst = arith.constant dense<0.000000e+00> : vector<256x128xf32>
    %6 = tpu.matmul %4, %5, %cst {dimension_numbers = #tpu.dot_dimension_numbers<[1], [0], [0], [1], [0, 0, 1, 1], [], []>} : vector<256x384xbf16>, vector<384x128xbf16>, vector<256x128xf32> -> vector<256x128xf32>
    %7 = arith.addf %3, %6 : vector<256x128xf32>
    %c0_6 = arith.constant 0 : index
    %c0_7 = arith.constant 0 : index
    %8 = vector.load %arg6[%c0_6, %c0_7] : memref<256x128xf32, #tpu.memory_space<vmem>>, vector<256x128xf32>
    tpu.vector_store %arg6[%c0_6, %c0_7], %7 {strides = array<i32>} : memref<256x128xf32, #tpu.memory_space<vmem>>, vector<256x128xf32>,
    %c0_i32_8 = arith.constant 0 : i32
    %9 = arith.cmpi eq, %arg2, %c0_i32_8 : i32
    %10 = arith.extui %9 : i1 to i32
    %c0_i32_9 = arith.constant 0 : i32
    %11 = arith.cmpi ne, %10, %c0_i32_9 : i32
    scf.if %11 {
      %c0_10 = arith.constant 0 : index
      %c0_11 = arith.constant 0 : index
      %12 = vector.load %arg6[%c0_10, %c0_11] : memref<256x128xf32, #tpu.memory_space<vmem>>, vector<256x128xf32>
      %c0_12 = arith.constant 0 : index
      %c0_13 = arith.constant 0 : index
      %13 = vector.load %arg5[%c0_12, %c0_13] : memref<256x128xf32, #tpu.memory_space<vmem>>, vector<256x128xf32>
      tpu.vector_store %arg5[%c0_12, %c0_13], %12 {strides = array<i32>} : memref<256x128xf32, #tpu.memory_space<vmem>>, vector<256x128xf32>,
    } else {
    }
    return
  }
  func.func @transform_0(%arg0: i32, %arg1: i32, %arg2: i32) -> (i32, i32) {
    %c0_i32 = arith.constant 0 : i32
    return %arg0, %arg2 : i32, i32
  }
  func.func @transform_1(%arg0: i32, %arg1: i32, %arg2: i32) -> (i32, i32) {
    %c0_i32 = arith.constant 0 : i32
    return %arg2, %arg1 : i32, i32
  }
  func.func @transform_2(%arg0: i32, %arg1: i32, %arg2: i32) -> (i32, i32) {
    %c0_i32 = arith.constant 0 : i32
    return %arg0, %arg1 : i32, i32
  }
}

module attributes {stable_mosaic.version = 11 : i64} {
  func.func @_inorm_kernel(%arg0: i32, %arg1: i32, %arg2: memref<1x256x128xf32, #tpu.memory_space<vmem>>, %arg3: memref<1x1x128xf32, #tpu.memory_space<vmem>>, %arg4: memref<1x1x128xf32, #tpu.memory_space<vmem>>, %arg5: memref<1x256x128xf32, #tpu.memory_space<vmem>>) attributes {dimension_semantics = [#tpu.dimension_semantics<parallel>, #tpu.dimension_semantics<parallel>], iteration_bounds = array<i64: 2, 1>, scalar_prefetch = 0 : i64, scratch_operands = 0 : i64, tpu.core_type = #tpu.core_type<tc>, window_params = [{transform_indices = @transform_0, window_bounds = array<i64: 1, 256, 128>}, {transform_indices = @transform_1, window_bounds = array<i64: 1, 1, 128>}, {transform_indices = @transform_2, window_bounds = array<i64: 1, 1, 128>}, {transform_indices = @transform_3, window_bounds = array<i64: 1, 256, 128>}]} {
    %c0 = arith.constant 0 : index
    %c0_0 = arith.constant 0 : index
    %c0_1 = arith.constant 0 : index
    %0 = vector.load %arg2[%c0, %c0_0, %c0_1] : memref<1x256x128xf32, #tpu.memory_space<vmem>>, vector<1x256x128xf32>
    %c0_2 = arith.constant 0 : index
    %c0_3 = arith.constant 0 : index
    %c0_4 = arith.constant 0 : index
    %1 = vector.load %arg3[%c0_2, %c0_3, %c0_4] : memref<1x1x128xf32, #tpu.memory_space<vmem>>, vector<1x1x128xf32>
    %c0_5 = arith.constant 0 : index
    %c0_6 = arith.constant 0 : index
    %c0_7 = arith.constant 0 : index
    %2 = vector.load %arg4[%c0_5, %c0_6, %c0_7] : memref<1x1x128xf32, #tpu.memory_space<vmem>>, vector<1x1x128xf32>
    %cst = arith.constant dense<0.000000e+00> : vector<1x128xf32>
    %3 = vector.multi_reduction <add>, %0, %cst [1] : vector<1x256x128xf32> to vector<1x128xf32>
    %4 = vector.shape_cast %3 : vector<1x128xf32> to vector<1x1x128xf32>
    %cst_8 = arith.constant 2.560000e+02 : f32
    %5 = vector.broadcast %cst_8 : f32 to vector<1x1x128xf32>
    %6 = arith.divf %4, %5 : vector<1x1x128xf32>
    %7 = vector.broadcast %6 : vector<1x1x128xf32> to vector<1x256x128xf32>
    %8 = arith.subf %0, %7 : vector<1x256x128xf32>
    %9 = arith.mulf %8, %8 : vector<1x256x128xf32>
    %cst_9 = arith.constant dense<0.000000e+00> : vector<1x128xf32>
    %10 = vector.multi_reduction <add>, %9, %cst_9 [1] : vector<1x256x128xf32> to vector<1x128xf32>
    %11 = vector.shape_cast %10 : vector<1x128xf32> to vector<1x1x128xf32>
    %cst_10 = arith.constant 2.560000e+02 : f32
    %12 = vector.broadcast %cst_10 : f32 to vector<1x1x128xf32>
    %13 = arith.divf %11, %12 : vector<1x1x128xf32>
    %cst_11 = arith.constant 9.99999974E-6 : f32
    %14 = vector.broadcast %cst_11 : f32 to vector<1x1x128xf32>
    %15 = arith.addf %13, %14 : vector<1x1x128xf32>
    %16 = math.rsqrt %15 : vector<1x1x128xf32>
    %17 = vector.broadcast %16 : vector<1x1x128xf32> to vector<1x256x128xf32>
    %18 = arith.mulf %8, %17 : vector<1x256x128xf32>
    %19 = vector.broadcast %1 : vector<1x1x128xf32> to vector<1x256x128xf32>
    %20 = arith.mulf %18, %19 : vector<1x256x128xf32>
    %21 = vector.broadcast %2 : vector<1x1x128xf32> to vector<1x256x128xf32>
    %22 = arith.addf %20, %21 : vector<1x256x128xf32>
    %cst_12 = arith.constant 0.000000e+00 : f32
    %23 = vector.broadcast %cst_12 : f32 to vector<1x256x128xf32>
    %24 = arith.maximumf %22, %23 : vector<1x256x128xf32>
    %c0_13 = arith.constant 0 : index
    %c0_14 = arith.constant 0 : index
    %c0_15 = arith.constant 0 : index
    %25 = vector.load %arg5[%c0_13, %c0_14, %c0_15] : memref<1x256x128xf32, #tpu.memory_space<vmem>>, vector<1x256x128xf32>
    tpu.vector_store %arg5[%c0_13, %c0_14, %c0_15], %24 {strides = array<i32>} : memref<1x256x128xf32, #tpu.memory_space<vmem>>, vector<1x256x128xf32>,
    return
  }
  func.func @transform_0(%arg0: i32, %arg1: i32) -> (i32, i32, i32) {
    %c0_i32 = arith.constant 0 : i32
    %c0_i32_0 = arith.constant 0 : i32
    return %arg0, %c0_i32, %arg1 : i32, i32, i32
  }
  func.func @transform_1(%arg0: i32, %arg1: i32) -> (i32, i32, i32) {
    %c0_i32 = arith.constant 0 : i32
    %c0_i32_0 = arith.constant 0 : i32
    %c0_i32_1 = arith.constant 0 : i32
    return %c0_i32, %c0_i32_0, %arg1 : i32, i32, i32
  }
  func.func @transform_2(%arg0: i32, %arg1: i32) -> (i32, i32, i32) {
    %c0_i32 = arith.constant 0 : i32
    %c0_i32_0 = arith.constant 0 : i32
    %c0_i32_1 = arith.constant 0 : i32
    return %c0_i32, %c0_i32_0, %arg1 : i32, i32, i32
  }
  func.func @transform_3(%arg0: i32, %arg1: i32) -> (i32, i32, i32) {
    %c0_i32 = arith.constant 0 : i32
    %c0_i32_0 = arith.constant 0 : i32
    return %arg0, %c0_i32, %arg1 : i32, i32, i32
  }
}

module attributes {stable_mosaic.version = 11 : i64} {
  func.func @_inorm_res_kernel(%arg0: i32, %arg1: i32, %arg2: memref<1x256x128xf32, #tpu.memory_space<vmem>>, %arg3: memref<1x1x128xf32, #tpu.memory_space<vmem>>, %arg4: memref<1x1x128xf32, #tpu.memory_space<vmem>>, %arg5: memref<1x256x128xf32, #tpu.memory_space<vmem>>, %arg6: memref<1x256x128xf32, #tpu.memory_space<vmem>>) attributes {dimension_semantics = [#tpu.dimension_semantics<parallel>, #tpu.dimension_semantics<parallel>], iteration_bounds = array<i64: 2, 1>, scalar_prefetch = 0 : i64, scratch_operands = 0 : i64, tpu.core_type = #tpu.core_type<tc>, window_params = [{transform_indices = @transform_0, window_bounds = array<i64: 1, 256, 128>}, {transform_indices = @transform_1, window_bounds = array<i64: 1, 1, 128>}, {transform_indices = @transform_2, window_bounds = array<i64: 1, 1, 128>}, {transform_indices = @transform_3, window_bounds = array<i64: 1, 256, 128>}, {transform_indices = @transform_4, window_bounds = array<i64: 1, 256, 128>}]} {
    %c0 = arith.constant 0 : index
    %c0_0 = arith.constant 0 : index
    %c0_1 = arith.constant 0 : index
    %0 = vector.load %arg2[%c0, %c0_0, %c0_1] : memref<1x256x128xf32, #tpu.memory_space<vmem>>, vector<1x256x128xf32>
    %c0_2 = arith.constant 0 : index
    %c0_3 = arith.constant 0 : index
    %c0_4 = arith.constant 0 : index
    %1 = vector.load %arg3[%c0_2, %c0_3, %c0_4] : memref<1x1x128xf32, #tpu.memory_space<vmem>>, vector<1x1x128xf32>
    %c0_5 = arith.constant 0 : index
    %c0_6 = arith.constant 0 : index
    %c0_7 = arith.constant 0 : index
    %2 = vector.load %arg4[%c0_5, %c0_6, %c0_7] : memref<1x1x128xf32, #tpu.memory_space<vmem>>, vector<1x1x128xf32>
    %cst = arith.constant dense<0.000000e+00> : vector<1x128xf32>
    %3 = vector.multi_reduction <add>, %0, %cst [1] : vector<1x256x128xf32> to vector<1x128xf32>
    %4 = vector.shape_cast %3 : vector<1x128xf32> to vector<1x1x128xf32>
    %cst_8 = arith.constant 2.560000e+02 : f32
    %5 = vector.broadcast %cst_8 : f32 to vector<1x1x128xf32>
    %6 = arith.divf %4, %5 : vector<1x1x128xf32>
    %7 = vector.broadcast %6 : vector<1x1x128xf32> to vector<1x256x128xf32>
    %8 = arith.subf %0, %7 : vector<1x256x128xf32>
    %9 = arith.mulf %8, %8 : vector<1x256x128xf32>
    %cst_9 = arith.constant dense<0.000000e+00> : vector<1x128xf32>
    %10 = vector.multi_reduction <add>, %9, %cst_9 [1] : vector<1x256x128xf32> to vector<1x128xf32>
    %11 = vector.shape_cast %10 : vector<1x128xf32> to vector<1x1x128xf32>
    %cst_10 = arith.constant 2.560000e+02 : f32
    %12 = vector.broadcast %cst_10 : f32 to vector<1x1x128xf32>
    %13 = arith.divf %11, %12 : vector<1x1x128xf32>
    %cst_11 = arith.constant 9.99999974E-6 : f32
    %14 = vector.broadcast %cst_11 : f32 to vector<1x1x128xf32>
    %15 = arith.addf %13, %14 : vector<1x1x128xf32>
    %16 = math.rsqrt %15 : vector<1x1x128xf32>
    %17 = vector.broadcast %16 : vector<1x1x128xf32> to vector<1x256x128xf32>
    %18 = arith.mulf %8, %17 : vector<1x256x128xf32>
    %19 = vector.broadcast %1 : vector<1x1x128xf32> to vector<1x256x128xf32>
    %20 = arith.mulf %18, %19 : vector<1x256x128xf32>
    %21 = vector.broadcast %2 : vector<1x1x128xf32> to vector<1x256x128xf32>
    %22 = arith.addf %20, %21 : vector<1x256x128xf32>
    %c0_12 = arith.constant 0 : index
    %c0_13 = arith.constant 0 : index
    %c0_14 = arith.constant 0 : index
    %23 = vector.load %arg5[%c0_12, %c0_13, %c0_14] : memref<1x256x128xf32, #tpu.memory_space<vmem>>, vector<1x256x128xf32>
    %24 = arith.addf %22, %23 : vector<1x256x128xf32>
    %c0_15 = arith.constant 0 : index
    %c0_16 = arith.constant 0 : index
    %c0_17 = arith.constant 0 : index
    %25 = vector.load %arg6[%c0_15, %c0_16, %c0_17] : memref<1x256x128xf32, #tpu.memory_space<vmem>>, vector<1x256x128xf32>
    tpu.vector_store %arg6[%c0_15, %c0_16, %c0_17], %24 {strides = array<i32>} : memref<1x256x128xf32, #tpu.memory_space<vmem>>, vector<1x256x128xf32>,
    return
  }
  func.func @transform_0(%arg0: i32, %arg1: i32) -> (i32, i32, i32) {
    %c0_i32 = arith.constant 0 : i32
    %c0_i32_0 = arith.constant 0 : i32
    return %arg0, %c0_i32, %arg1 : i32, i32, i32
  }
  func.func @transform_1(%arg0: i32, %arg1: i32) -> (i32, i32, i32) {
    %c0_i32 = arith.constant 0 : i32
    %c0_i32_0 = arith.constant 0 : i32
    %c0_i32_1 = arith.constant 0 : i32
    return %c0_i32, %c0_i32_0, %arg1 : i32, i32, i32
  }
  func.func @transform_2(%arg0: i32, %arg1: i32) -> (i32, i32, i32) {
    %c0_i32 = arith.constant 0 : i32
    %c0_i32_0 = arith.constant 0 : i32
    %c0_i32_1 = arith.constant 0 : i32
    return %c0_i32, %c0_i32_0, %arg1 : i32, i32, i32
  }
  func.func @transform_3(%arg0: i32, %arg1: i32) -> (i32, i32, i32) {
    %c0_i32 = arith.constant 0 : i32
    %c0_i32_0 = arith.constant 0 : i32
    return %arg0, %c0_i32, %arg1 : i32, i32, i32
  }
  func.func @transform_4(%arg0: i32, %arg1: i32) -> (i32, i32, i32) {
    %c0_i32 = arith.constant 0 : i32
    %c0_i32_0 = arith.constant 0 : i32
    return %arg0, %c0_i32, %arg1 : i32, i32, i32
  }
}

</mosaic_0001>

<llo_original>
// kernel: forward.4
$region0: #{forward.4}
  #allocation0 [shape = 'u32[]', space=smem, size = 0x4, offset = 0x4, fixed_abs, tag = 'smem constant byte address 0x4 - core index']
  #allocation1 [shape = 'u32[144,128]{1,0:T(1,128)}', space=vmem, size = 0x12000, scoped, tag = 'internal scratch']
  #allocation2 [shape = 'f32[256,128]{1,0:T(8,128)}', space=vmem, size = 0x20000, scoped, tag = 'scratch operand']
  %s0 = inlined_call_operand.vmem [shape: bf16[512,384], index: 0, kind: input, shape index: {}]
  %s1 = inlined_call_operand.vmem [shape: bf16[384,128], index: 1, kind: input, shape index: {}]
  %s2 = inlined_call_operand.vmem [shape: f32[512,128], index: 2, kind: output, shape index: {}]
  %s3 = sld [smem:[#allocation0]]
  $region49: #{forward.4} parent=0
    _
  %s5 = ssub.s32 1, %s3
  %s6 = scalar_select 0, %s5, %s3
  loop: start=0, step=1, limit=4
  $region2: #{forward.4} parent=0 // loop_pre_header
    _
  $region3: #{forward.4} parent=0 // loop_header
    %s8 = sphi 0, %s12
    %p9 = scmp.ge.s32.totalorder %s8, 4
    %s15 = sphi 0, %s34
    %s16 = sphi 0, %s30
    %s17 = sphi 0, %s26
    %s18 = sphi 0, %s15
    %s19 = sphi 0, %s16
    %s20 = sphi 0, %s17
    %s21 = sphi 0, %s18
    %s22 = sphi 0, %s19
    %s23 = sphi 0, %s20
    %s39 = sphi 0, %s41
    %s42 = sphi 0, %s39
    %s43 = sphi 0, %s42
    %s59 = sphi 0, %s43
    %s67 = sphi 0, %s69
    %s70 = sphi 0, %s67
    %s71 = sphi 0, %s70
    %s87 = sphi 0, %s71
    %s95 = sphi 0, %s97
    %s98 = sphi 0, %s95
    %s99 = sphi 0, %s98
    %s115 = sphi 0, %s99
  $region4: #{forward.4} parent=0 // loop_header_branch
    %11 = sbr.rel (%p9) target = $region8
  $region5: #{forward.4} parent=0 // loop_body
    %s13 = ssub.s32 %s8, 1
    %s14 = ssub.s32 %s8, 2
    %s24 = sadd.s32 1, %s17
    %p25 = scmp.ge.s32.totalorder %s24, 1
    %s26 = scalar_select %p25, 0, %s24
    %s27 = sadd.s32 1, %s16
    %s28 = scalar_select %p25, %s27, %s16
    %p29 = scmp.ge.s32.totalorder %s28, 1
    %s30 = scalar_select %p29, 0, %s28
    %s31 = sadd.s32 1, %s15
    %s32 = scalar_select %p29, %s31, %s15
    %p33 = scmp.ge.s32.totalorder %s32, 2
    %s34 = scalar_select %p33, 0, %s32
    %s35 = ssub.s32 %s15, %s34
    %s36 = ssub.s32 %s17, %s26
    %s37 = sor.u32 %s35, %s36
    %p38 = scmp.eq.s32.totalorder %s37, 0
    %s40 = sadd.s32 %s39, 1
    %s41 = scalar_select %p38, %s39, %s40
    %p44 = pneg %p38
    %p45 = scmp.eq.s32.totalorder %s8, 1
    %p46 = por %p44, %p45
    %p47 = scmp.ne.s32.totalorder %s39, %s42
    %p48 = scmp.eq.s32.totalorder %s8, 0
    %p49 = por %p47, %p48
    %p50 = scmp.ne.s32.totalorder %s39, %s42
    %p51 = scmp.eq.s32.totalorder %s13, 1
    %p52 = por %p50, %p51
    %p53 = scmp.ne.s32.totalorder %s42, %s43
    %p54 = scmp.eq.s32.totalorder %s13, 0
    %p55 = por %p53, %p54
    %p56 = scmp.ne.s32.totalorder %s42, %s43
    %p57 = scmp.eq.s32.totalorder %s14, 1
    %p58 = por %p56, %p57
    %p60 = scmp.ne.s32.totalorder %s43, %s59
    %p61 = scmp.eq.s32.totalorder %s14, 0
    %p62 = por %p60, %p61
    %s63 = ssub.s32 %s17, %s26
    %s64 = ssub.s32 %s16, %s30
    %s65 = sor.u32 %s63, %s64
    %p66 = scmp.eq.s32.totalorder %s65, 0
    %s68 = sadd.s32 %s67, 1
    %s69 = scalar_select %p66, %s67, %s68
    %p72 = pneg %p66
    %p73 = scmp.eq.s32.totalorder %s8, 1
    %p74 = por %p72, %p73
    %p75 = scmp.ne.s32.totalorder %s67, %s70
    %p76 = scmp.eq.s32.totalorder %s8, 0
    %p77 = por %p75, %p76
    %p78 = scmp.ne.s32.totalorder %s67, %s70
    %p79 = scmp.eq.s32.totalorder %s13, 1
    %p80 = por %p78, %p79
    %p81 = scmp.ne.s32.totalorder %s70, %s71
    %p82 = scmp.eq.s32.totalorder %s13, 0
    %p83 = por %p81, %p82
    %p84 = scmp.ne.s32.totalorder %s70, %s71
    %p85 = scmp.eq.s32.totalorder %s14, 1
    %p86 = por %p84, %p85
    %p88 = scmp.ne.s32.totalorder %s71, %s87
    %p89 = scmp.eq.s32.totalorder %s14, 0
    %p90 = por %p88, %p89
    %s91 = ssub.s32 %s15, %s34
    %s92 = ssub.s32 %s16, %s30
    %s93 = sor.u32 %s91, %s92
    %p94 = scmp.eq.s32.totalorder %s93, 0
    %s96 = sadd.s32 %s95, 1
    %s97 = scalar_select %p94, %s95, %s96
    %p100 = pneg %p94
    %p101 = scmp.eq.s32.totalorder %s8, 1
    %p102 = por %p100, %p101
    %p103 = scmp.ne.s32.totalorder %s95, %s98
    %p104 = scmp.eq.s32.totalorder %s8, 0
    %p105 = por %p103, %p104
    %p106 = scmp.ne.s32.totalorder %s95, %s98
    %p107 = scmp.eq.s32.totalorder %s13, 1
    %p108 = por %p106, %p107
    %p109 = scmp.ne.s32.totalorder %s98, %s99
    %p110 = scmp.eq.s32.totalorder %s13, 0
    %p111 = por %p109, %p110
    %p112 = scmp.ne.s32.totalorder %s98, %s99
    %p113 = scmp.eq.s32.totalorder %s14, 1
    %p114 = por %p112, %p113
    %p116 = scmp.ne.s32.totalorder %s99, %s115
    %p117 = scmp.eq.s32.totalorder %s14, 0
    %p118 = por %p116, %p117
    %p119 = scmp.le.s32.totalorder 1, %s8
    %p120 = scmp.lt.s32.totalorder %s8, 3
    %p121 = pnand %p119, %p120
    %p122 = pneg %p121
    // Predicated region
    $region9: #{forward.4} parent=5 // pred_check
      _
    $region10: #{forward.4} parent=5 // pred_check_branch
      %124 = sbr.rel (%p121) target = $region12
    $region11: #{forward.4} parent=5 // pred_region
      %s125 = ssub.s32 %s8, 1
      // Predicated region
      $region13: #{forward.4} parent=11 // pred_check
        %p126 = pneg %p83
      $region14: #{forward.4} parent=11 // pred_check_branch
        %128 = sbr.rel (%p126) target = $region16
      $region15: #{forward.4} parent=11 // pred_region
        %s129 = smul.u32 48, %s20
        %p130 = scmp.lt.s32.totalorder %s129, 47
        %s131 = scalar_select %p130, %s129, 47
        %p132 = scmp.lt.s32.totalorder %s19, 0
        %s133 = scalar_select %p132, %s19, 0
        %s134 = sadd.s32 %s133, %s131
        %s135 = smul.addr %s134, 4
        %s136 = scalar_lea.vmem %s1, %s135
        %s137 = smul.u32 48, %s20
      $region16: #{forward.4} parent=11 // pred_fallthru
        _
    $region12: #{forward.4} parent=5 // pred_fallthru
      _
    %p138 = scmp.lt.s32.totalorder %s8, 2
    // Predicated region
    $region17: #{forward.4} parent=5 // pred_check
      %p139 = pneg %p138
    $region18: #{forward.4} parent=5 // pred_check_branch
      %141 = sbr.rel (%p139) target = $region20
    $region19: #{forward.4} parent=5 // pred_region
      // Predicated region
      $region21: #{forward.4} parent=19 // pred_check
        %p142 = pneg %p49
      $region22: #{forward.4} parent=19 // pred_check_branch
        %144 = sbr.rel (%p142) target = $region24
      $region23: #{forward.4} parent=19 // pred_region
        %s145 = smul.u32 32, %s15
        %s146 = smul.u32 3, %s17
        %p147 = scmp.lt.s32.totalorder %s145, 63
        %s148 = scalar_select %p147, %s145, 63
        %p149 = scmp.lt.s32.totalorder %s146, 2
        %s150 = scalar_select %p149, %s146, 2
        %s151 = smul.addr %s148, 3
        %s152 = sadd.s32 %s150, %s151
        %s153 = smul.addr %s152, 4
        %s154 = scalar_lea.vmem %s0, %s153
        %s155 = smul.u32 32, %s15
        %s156 = smul.u32 3, %s17
      $region24: #{forward.4} parent=19 // pred_fallthru
        _
    $region20: #{forward.4} parent=5 // pred_fallthru
      _
    %p157 = scmp.le.s32.totalorder 1, %s8
    %p158 = scmp.lt.s32.totalorder %s8, 3
    %p159 = pnand %p157, %p158
    %p160 = pneg %p159
    // Predicated region
    $region25: #{forward.4} parent=5 // pred_check
      _
    $region26: #{forward.4} parent=5 // pred_check_branch
      %162 = sbr.rel (%p159) target = $region28
    $region27: #{forward.4} parent=5 // pred_region
      %s163 = ssub.s32 %s8, 1
      %s164 = smul.u32 32, %s18
      %s165 = smul.u32 3, %s20
      %p166 = scmp.lt.s32.totalorder %s164, 63
      %s167 = scalar_select %p166, %s164, 63
      %p168 = scmp.lt.s32.totalorder %s165, 2
      %s169 = scalar_select %p168, %s165, 2
      %s170 = smul.addr %s167, 3
      %s171 = sadd.s32 %s169, %s170
      %s172 = smul.addr %s171, 4
      %s173 = scalar_lea.vmem %s0, %s172
      %p174 = pneg %p55
      %p175 = pneg %p52
      %s176 = smul.u32 48, %s20
      %p177 = scmp.lt.s32.totalorder %s176, 47
      %s178 = scalar_select %p177, %s176, 47
      %p179 = scmp.lt.s32.totalorder %s19, 0
      %s180 = scalar_select %p179, %s19, 0
      %s181 = sadd.s32 %s180, %s178
      %s182 = smul.addr %s181, 4
      %s183 = scalar_lea.vmem %s1, %s182
      %p184 = pneg %p83
      %p185 = pneg %p80
      %p186 = pneg %p111
      %p187 = pneg %p108
      %s188 = smul.u32 32, %s18
      %p189 = scmp.lt.s32.totalorder %s188, 63
      %s190 = scalar_select %p189, %s188, 63
      %p191 = scmp.lt.s32.totalorder %s19, 0
      %s192 = scalar_select %p191, %s19, 0
      %s193 = sadd.s32 %s192, %s190
      %s194 = smul.addr %s193, 8
      %s195 = scalar_lea.vmem %s2, %s194
      %s196 = smul.u32 32, %s18
      %s197 = smul.u32 3, %s20
      %p198 = scmp.lt.s32.totalorder %s196, 63
      %s199 = scalar_select %p198, %s196, 63
      %p200 = scmp.lt.s32.totalorder %s197, 2
      %s201 = scalar_select %p200, %s197, 2
      %s202 = smul.addr %s199, 3
      %s203 = sadd.s32 %s201, %s202
      %s204 = smul.addr %s203, 4
      %s205 = scalar_lea.vmem %s0, %s204
      %s206 = smul.u32 32, %s18
      %s207 = smul.u32 3, %s20
      %s208 = smul.u32 48, %s20
      %p209 = scmp.lt.s32.totalorder %s208, 47
      %s210 = scalar_select %p209, %s208, 47
      %p211 = scmp.lt.s32.totalorder %s19, 0
      %s212 = scalar_select %p211, %s19, 0
      %s213 = sadd.s32 %s212, %s210
      %s214 = smul.addr %s213, 4
      %s215 = scalar_lea.vmem %s1, %s214
      %s216 = smul.u32 48, %s20
      %s217 = smul.u32 32, %s18
      %p218 = scmp.lt.s32.totalorder %s217, 63
      %s219 = scalar_select %p218, %s217, 63
      %p220 = scmp.lt.s32.totalorder %s19, 0
      %s221 = scalar_select %p220, %s19, 0
      %s222 = sadd.s32 %s221, %s219
      %s223 = smul.addr %s222, 8
      %s224 = scalar_lea.vmem %s2, %s223
      %s225 = smul.u32 32, %s18
      %p227 = scmp.eq.s32.totalorder %s20, 0
      // Predicated region
      $region29: #{forward.4} parent=27 // pred_check
        %p228 = pneg %p227
      $region30: #{forward.4} parent=27 // pred_check_branch
        %230 = sbr.rel (%p228) target = $region32
      $region31: #{forward.4} parent=27 // pred_region
        %231 = vst [vmem:[#allocation2] sm:$0xff] 0.0
        %232 = vst [vmem:[#allocation2 + $0x8] sm:$0xff] 0.0
        %233 = vst [vmem:[#allocation2 + $0x10] sm:$0xff] 0.0
        %234 = vst [vmem:[#allocation2 + $0x18] sm:$0xff] 0.0
        %235 = vst [vmem:[#allocation2 + $0x20] sm:$0xff] 0.0
        %236 = vst [vmem:[#allocation2 + $0x28] sm:$0xff] 0.0
        %237 = vst [vmem:[#allocation2 + $0x30] sm:$0xff] 0.0
        %238 = vst [vmem:[#allocation2 + $0x38] sm:$0xff] 0.0
        %239 = vst [vmem:[#allocation2 + $0x40] sm:$0xff] 0.0
        %240 = vst [vmem:[#allocation2 + $0x48] sm:$0xff] 0.0
        %241 = vst [vmem:[#allocation2 + $0x50] sm:$0xff] 0.0
        %242 = vst [vmem:[#allocation2 + $0x58] sm:$0xff] 0.0
        %243 = vst [vmem:[#allocation2 + $0x60] sm:$0xff] 0.0
        %244 = vst [vmem:[#allocation2 + $0x68] sm:$0xff] 0.0
        %245 = vst [vmem:[#allocation2 + $0x70] sm:$0xff] 0.0
        %246 = vst [vmem:[#allocation2 + $0x78] sm:$0xff] 0.0
        %247 = vst [vmem:[#allocation2 + $0x80] sm:$0xff] 0.0
        %248 = vst [vmem:[#allocation2 + $0x88] sm:$0xff] 0.0
        %249 = vst [vmem:[#allocation2 + $0x90] sm:$0xff] 0.0
        %250 = vst [vmem:[#allocation2 + $0x98] sm:$0xff] 0.0
        %251 = vst [vmem:[#allocation2 + $0xa0] sm:$0xff] 0.0
        %252 = vst [vmem:[#allocation2 + $0xa8] sm:$0xff] 0.0
        %253 = vst [vmem:[#allocation2 + $0xb0] sm:$0xff] 0.0
        %254 = vst [vmem:[#allocation2 + $0xb8] sm:$0xff] 0.0
        %255 = vst [vmem:[#allocation2 + $0xc0] sm:$0xff] 0.0
        %256 = vst [vmem:[#allocation2 + $0xc8] sm:$0xff] 0.0
        %257 = vst [vmem:[#allocation2 + $0xd0] sm:$0xff] 0.0
        %258 = vst [vmem:[#allocation2 + $0xd8] sm:$0xff] 0.0
        %259 = vst [vmem:[#allocation2 + $0xe0] sm:$0xff] 0.0
        %260 = vst [vmem:[#allocation2 + $0xe8] sm:$0xff] 0.0
        %261 = vst [vmem:[#allocation2 + $0xf0] sm:$0xff] 0.0
        %262 = vst [vmem:[#allocation2 + $0xf8] sm:$0xff] 0.0
      $region32: #{forward.4} parent=27 // pred_fallthru
        _
      %v263 = vld [vmem:[#allocation2] sm:$0xff]
      %v264 = vld [vmem:[#allocation2 + $0x8] sm:$0xff]
      %v265 = vld [vmem:[#allocation2 + $0x10] sm:$0xff]
      %v266 = vld [vmem:[#allocation2 + $0x18] sm:$0xff]
      %v267 = vld [vmem:[#allocation2 + $0x20] sm:$0xff]
      %v268 = vld [vmem:[#allocation2 + $0x28] sm:$0xff]
      %v269 = vld [vmem:[#allocation2 + $0x30] sm:$0xff]
      %v270 = vld [vmem:[#allocation2 + $0x38] sm:$0xff]
      %v271 = vld [vmem:[#allocation2 + $0x40] sm:$0xff]
      %v272 = vld [vmem:[#allocation2 + $0x48] sm:$0xff]
      %v273 = vld [vmem:[#allocation2 + $0x50] sm:$0xff]
      %v274 = vld [vmem:[#allocation2 + $0x58] sm:$0xff]
      %v275 = vld [vmem:[#allocation2 + $0x60] sm:$0xff]
      %v276 = vld [vmem:[#allocation2 + $0x68] sm:$0xff]
      %v277 = vld [vmem:[#allocation2 + $0x70] sm:$0xff]
      %v278 = vld [vmem:[#allocation2 + $0x78] sm:$0xff]
      %v279 = vld [vmem:[#allocation2 + $0x80] sm:$0xff]
      %v280 = vld [vmem:[#allocation2 + $0x88] sm:$0xff]
      %v281 = vld [vmem:[#allocation2 + $0x90] sm:$0xff]
      %v282 = vld [vmem:[#allocation2 + $0x98] sm:$0xff]
      %v283 = vld [vmem:[#allocation2 + $0xa0] sm:$0xff]
      %v284 = vld [vmem:[#allocation2 + $0xa8] sm:$0xff]
      %v285 = vld [vmem:[#allocation2 + $0xb0] sm:$0xff]
      %v286 = vld [vmem:[#allocation2 + $0xb8] sm:$0xff]
      %v287 = vld [vmem:[#allocation2 + $0xc0] sm:$0xff]
      %v288 = vld [vmem:[#allocation2 + $0xc8] sm:$0xff]
      %v289 = vld [vmem:[#allocation2 + $0xd0] sm:$0xff]
      %v290 = vld [vmem:[#allocation2 + $0xd8] sm:$0xff]
      %v291 = vld [vmem:[#allocation2 + $0xe0] sm:$0xff]
      %v292 = vld [vmem:[#allocation2 + $0xe8] sm:$0xff]
      %v293 = vld [vmem:[#allocation2 + $0xf0] sm:$0xff]
      %v294 = vld [vmem:[#allocation2 + $0xf8] sm:$0xff]
      %v295 = vld [vmem:[%s205] sm:$0xff]
      %v296 = vld [vmem:[%s205 + $0x8] sm:$0xf]
      %v297 = vld [vmem:[%s205 + $0xc] sm:$0xff]
      %v298 = vld [vmem:[%s205 + $0x14] sm:$0xf]
      %v299 = vld [vmem:[%s205 + $0x18] sm:$0xff]
      %v300 = vld [vmem:[%s205 + $0x20] sm:$0xf]
      %v301 = vld [vmem:[%s205 + $0x24] sm:$0xff]
      %v302 = vld [vmem:[%s205 + $0x2c] sm:$0xf]
      %v303 = vld [vmem:[%s205 + $0x30] sm:$0xff]
      %v304 = vld [vmem:[%s205 + $0x38] sm:$0xf]
      %v305 = vld [vmem:[%s205 + $0x3c] sm:$0xff]
      %v306 = vld [vmem:[%s205 + $0x44] sm:$0xf]
      %v307 = vld [vmem:[%s205 + $0x48] sm:$0xff]
      %v308 = vld [vmem:[%s205 + $0x50] sm:$0xf]
      %v309 = vld [vmem:[%s205 + $0x54] sm:$0xff]
      %v310 = vld [vmem:[%s205 + $0x5c] sm:$0xf]
      %v311 = vld [vmem:[%s205 + $0x60] sm:$0xff]
      %v312 = vld [vmem:[%s205 + $0x68] sm:$0xf]
      %v313 = vld [vmem:[%s205 + $0x6c] sm:$0xff]
      %v314 = vld [vmem:[%s205 + $0x74] sm:$0xf]
      %v315 = vld [vmem:[%s205 + $0x78] sm:$0xff]
      %v316 = vld [vmem:[%s205 + $0x80] sm:$0xf]
      %v317 = vld [vmem:[%s205 + $0x84] sm:$0xff]
      %v318 = vld [vmem:[%s205 + $0x8c] sm:$0xf]
      %v319 = vld [vmem:[%s205 + $0x90] sm:$0xff]
      %v320 = vld [vmem:[%s205 + $0x98] sm:$0xf]
      %v321 = vld [vmem:[%s205 + $0x9c] sm:$0xff]
      %v322 = vld [vmem:[%s205 + $0xa4] sm:$0xf]
      %v323 = vld [vmem:[%s205 + $0xa8] sm:$0xff]
      %v324 = vld [vmem:[%s205 + $0xb0] sm:$0xf]
      %v325 = vld [vmem:[%s205 + $0xb4] sm:$0xff]
      %v326 = vld [vmem:[%s205 + $0xbc] sm:$0xf]
      %v327 = vld [vmem:[%s205 + $0xc0] sm:$0xff]
      %v328 = vld [vmem:[%s205 + $0xc8] sm:$0xf]
      %v329 = vld [vmem:[%s205 + $0xcc] sm:$0xff]
      %v330 = vld [vmem:[%s205 + $0xd4] sm:$0xf]
      %v331 = vld [vmem:[%s205 + $0xd8] sm:$0xff]
      %v332 = vld [vmem:[%s205 + $0xe0] sm:$0xf]
      %v333 = vld [vmem:[%s205 + $0xe4] sm:$0xff]
      %v334 = vld [vmem:[%s205 + $0xec] sm:$0xf]
      %v335 = vld [vmem:[%s205 + $0xf0] sm:$0xff]
      %v336 = vld [vmem:[%s205 + $0xf8] sm:$0xf]
      %v337 = vld [vmem:[%s205 + $0xfc] sm:$0xff]
      %v338 = vld [vmem:[%s205 + $0x104] sm:$0xf]
      %v339 = vld [vmem:[%s205 + $0x108] sm:$0xff]
      %v340 = vld [vmem:[%s205 + $0x110] sm:$0xf]
      %v341 = vld [vmem:[%s205 + $0x114] sm:$0xff]
      %v342 = vld [vmem:[%s205 + $0x11c] sm:$0xf]
      %v343 = vld [vmem:[%s205 + $0x120] sm:$0xff]
      %v344 = vld [vmem:[%s205 + $0x128] sm:$0xf]
      %v345 = vld [vmem:[%s205 + $0x12c] sm:$0xff]
      %v346 = vld [vmem:[%s205 + $0x134] sm:$0xf]
      %v347 = vld [vmem:[%s205 + $0x138] sm:$0xff]
      %v348 = vld [vmem:[%s205 + $0x140] sm:$0xf]
      %v349 = vld [vmem:[%s205 + $0x144] sm:$0xff]
      %v350 = vld [vmem:[%s205 + $0x14c] sm:$0xf]
      %v351 = vld [vmem:[%s205 + $0x150] sm:$0xff]
      %v352 = vld [vmem:[%s205 + $0x158] sm:$0xf]
      %v353 = vld [vmem:[%s205 + $0x15c] sm:$0xff]
      %v354 = vld [vmem:[%s205 + $0x164] sm:$0xf]
      %v355 = vld [vmem:[%s205 + $0x168] sm:$0xff]
      %v356 = vld [vmem:[%s205 + $0x170] sm:$0xf]
      %v357 = vld [vmem:[%s205 + $0x174] sm:$0xff]
      %v358 = vld [vmem:[%s205 + $0x17c] sm:$0xf]
      %v359 = vld [vmem:[%s215] sm:$0xf]
      %v360 = vld [vmem:[%s215 + $0x4] sm:$0xf]
      %v361 = vld [vmem:[%s215 + $0x8] sm:$0xf]
      %v362 = vld [vmem:[%s215 + $0xc] sm:$0xf]
      %v363 = vld [vmem:[%s215 + $0x10] sm:$0xf]
      %v364 = vld [vmem:[%s215 + $0x14] sm:$0xf]
      %v365 = vld [vmem:[%s215 + $0x18] sm:$0xf]
      %v366 = vld [vmem:[%s215 + $0x1c] sm:$0xf]
      %v367 = vld [vmem:[%s215 + $0x20] sm:$0xf]
      %v368 = vld [vmem:[%s215 + $0x24] sm:$0xf]
      %v369 = vld [vmem:[%s215 + $0x28] sm:$0xf]
      %v370 = vld [vmem:[%s215 + $0x2c] sm:$0xf]
      %v371 = vld [vmem:[%s215 + $0x30] sm:$0xf]
      %v372 = vld [vmem:[%s215 + $0x34] sm:$0xf]
      %v373 = vld [vmem:[%s215 + $0x38] sm:$0xf]
      %v374 = vld [vmem:[%s215 + $0x3c] sm:$0xf]
      %v375 = vld [vmem:[%s215 + $0x40] sm:$0xf]
      %v376 = vld [vmem:[%s215 + $0x44] sm:$0xf]
      %v377 = vld [vmem:[%s215 + $0x48] sm:$0xf]
      %v378 = vld [vmem:[%s215 + $0x4c] sm:$0xf]
      %v379 = vld [vmem:[%s215 + $0x50] sm:$0xf]
      %v380 = vld [vmem:[%s215 + $0x54] sm:$0xf]
      %v381 = vld [vmem:[%s215 + $0x58] sm:$0xf]
      %v382 = vld [vmem:[%s215 + $0x5c] sm:$0xf]
      %v383 = vld [vmem:[%s215 + $0x60] sm:$0xf]
      %v384 = vld [vmem:[%s215 + $0x64] sm:$0xf]
      %v385 = vld [vmem:[%s215 + $0x68] sm:$0xf]
      %v386 = vld [vmem:[%s215 + $0x6c] sm:$0xf]
      %v387 = vld [vmem:[%s215 + $0x70] sm:$0xf]
      %v388 = vld [vmem:[%s215 + $0x74] sm:$0xf]
      %v389 = vld [vmem:[%s215 + $0x78] sm:$0xf]
      %v390 = vld [vmem:[%s215 + $0x7c] sm:$0xf]
      %v391 = vld [vmem:[%s215 + $0x80] sm:$0xf]
      %v392 = vld [vmem:[%s215 + $0x84] sm:$0xf]
      %v393 = vld [vmem:[%s215 + $0x88] sm:$0xf]
      %v394 = vld [vmem:[%s215 + $0x8c] sm:$0xf]
      %v395 = vld [vmem:[%s215 + $0x90] sm:$0xf]
      %v396 = vld [vmem:[%s215 + $0x94] sm:$0xf]
      %v397 = vld [vmem:[%s215 + $0x98] sm:$0xf]
      %v398 = vld [vmem:[%s215 + $0x9c] sm:$0xf]
      %v399 = vld [vmem:[%s215 + $0xa0] sm:$0xf]
      %v400 = vld [vmem:[%s215 + $0xa4] sm:$0xf]
      %v401 = vld [vmem:[%s215 + $0xa8] sm:$0xf]
      %v402 = vld [vmem:[%s215 + $0xac] sm:$0xf]
      %v403 = vld [vmem:[%s215 + $0xb0] sm:$0xf]
      %v404 = vld [vmem:[%s215 + $0xb4] sm:$0xf]
      %v405 = vld [vmem:[%s215 + $0xb8] sm:$0xf]
      %v406 = vld [vmem:[%s215 + $0xbc] sm:$0xf]
      %v471 = vunpack.c.l.b16 %v295
      %v472 = vunpack.c.h.b16 %v295
      %v473 = vunpack.c.l.b16 %v296
      %v474 = vunpack.c.l.b16 %v297
      %v475 = vunpack.c.h.b16 %v297
      %v476 = vunpack.c.l.b16 %v298
      %v477 = vunpack.c.l.b16 %v299
      %v478 = vunpack.c.h.b16 %v299
      %v479 = vunpack.c.l.b16 %v300
      %v480 = vunpack.c.l.b16 %v301
      %v481 = vunpack.c.h.b16 %v301
      %v482 = vunpack.c.l.b16 %v302
      %v483 = vunpack.c.l.b16 %v303
      %v484 = vunpack.c.h.b16 %v303
      %v485 = vunpack.c.l.b16 %v304
      %v486 = vunpack.c.l.b16 %v305
      %v487 = vunpack.c.h.b16 %v305
      %v488 = vunpack.c.l.b16 %v306
      %v489 = vunpack.c.l.b16 %v307
      %v490 = vunpack.c.h.b16 %v307
      %v491 = vunpack.c.l.b16 %v308
      %v492 = vunpack.c.l.b16 %v309
      %v493 = vunpack.c.h.b16 %v309
      %v494 = vunpack.c.l.b16 %v310
      %v495 = vunpack.c.l.b16 %v311
      %v496 = vunpack.c.h.b16 %v311
      %v497 = vunpack.c.l.b16 %v312
      %v498 = vunpack.c.l.b16 %v313
      %v499 = vunpack.c.h.b16 %v313
      %v500 = vunpack.c.l.b16 %v314
      %v501 = vunpack.c.l.b16 %v315
      %v502 = vunpack.c.h.b16 %v315
      %v503 = vunpack.c.l.b16 %v316
      %v504 = vunpack.c.l.b16 %v317
      %v505 = vunpack.c.h.b16 %v317
      %v506 = vunpack.c.l.b16 %v318
      %v507 = vunpack.c.l.b16 %v319
      %v508 = vunpack.c.h.b16 %v319
      %v509 = vunpack.c.l.b16 %v320
      %v510 = vunpack.c.l.b16 %v321
      %v511 = vunpack.c.h.b16 %v321
      %v512 = vunpack.c.l.b16 %v322
      %v513 = vunpack.c.l.b16 %v323
      %v514 = vunpack.c.h.b16 %v323
      %v515 = vunpack.c.l.b16 %v324
      %v516 = vunpack.c.l.b16 %v325
      %v517 = vunpack.c.h.b16 %v325
      %v518 = vunpack.c.l.b16 %v326
      %v519 = vunpack.c.l.b16 %v327
      %v520 = vunpack.c.h.b16 %v327
      %v521 = vunpack.c.l.b16 %v328
      %v522 = vunpack.c.l.b16 %v329
      %v523 = vunpack.c.h.b16 %v329
      %v524 = vunpack.c.l.b16 %v330
      %v525 = vunpack.c.l.b16 %v331
      %v526 = vunpack.c.h.b16 %v331
      %v527 = vunpack.c.l.b16 %v332
      %v528 = vunpack.c.l.b16 %v333
      %v529 = vunpack.c.h.b16 %v333
      %v530 = vunpack.c.l.b16 %v334
      %v531 = vunpack.c.l.b16 %v335
      %v532 = vunpack.c.h.b16 %v335
      %v533 = vunpack.c.l.b16 %v336
      %v534 = vunpack.c.l.b16 %v337
      %v535 = vunpack.c.h.b16 %v337
      %v536 = vunpack.c.l.b16 %v338
      %v537 = vunpack.c.l.b16 %v339
      %v538 = vunpack.c.h.b16 %v339
      %v539 = vunpack.c.l.b16 %v340
      %v540 = vunpack.c.l.b16 %v341
      %v541 = vunpack.c.h.b16 %v341
      %v542 = vunpack.c.l.b16 %v342
      %v543 = vunpack.c.l.b16 %v343
      %v544 = vunpack.c.h.b16 %v343
      %v545 = vunpack.c.l.b16 %v344
      %v546 = vunpack.c.l.b16 %v345
      %v547 = vunpack.c.h.b16 %v345
      %v548 = vunpack.c.l.b16 %v346
      %v549 = vunpack.c.l.b16 %v347
      %v550 = vunpack.c.h.b16 %v347
      %v551 = vunpack.c.l.b16 %v348
      %v552 = vunpack.c.l.b16 %v349
      %v553 = vunpack.c.h.b16 %v349
      %v554 = vunpack.c.l.b16 %v350
      %v555 = vunpack.c.l.b16 %v351
      %v556 = vunpack.c.h.b16 %v351
      %v557 = vunpack.c.l.b16 %v352
      %v558 = vunpack.c.l.b16 %v353
      %v559 = vunpack.c.h.b16 %v353
      %v560 = vunpack.c.l.b16 %v354
      %v561 = vunpack.c.l.b16 %v355
      %v562 = vunpack.c.h.b16 %v355
      %v563 = vunpack.c.l.b16 %v356
      %v564 = vunpack.c.l.b16 %v357
      %v565 = vunpack.c.h.b16 %v357
      %v566 = vunpack.c.l.b16 %v358
      %v567 = vpack.c.b16 %v474, %v471
      %v568 = vpack.c.b16 %v475, %v472
      %v569 = vpack.c.b16 %v476, %v473
      %v570 = vpack.c.b16 %v480, %v477
      %v571 = vpack.c.b16 %v481, %v478
      %v572 = vpack.c.b16 %v482, %v479
      %v573 = vpack.c.b16 %v486, %v483
      %v574 = vpack.c.b16 %v487, %v484
      %v575 = vpack.c.b16 %v488, %v485
      %v576 = vpack.c.b16 %v492, %v489
      %v577 = vpack.c.b16 %v493, %v490
      %v578 = vpack.c.b16 %v494, %v491
      %v579 = vpack.c.b16 %v498, %v495
      %v580 = vpack.c.b16 %v499, %v496
      %v581 = vpack.c.b16 %v500, %v497
      %v582 = vpack.c.b16 %v504, %v501
      %v583 = vpack.c.b16 %v505, %v502
      %v584 = vpack.c.b16 %v506, %v503
      %v585 = vpack.c.b16 %v510, %v507
      %v586 = vpack.c.b16 %v511, %v508
      %v587 = vpack.c.b16 %v512, %v509
      %v588 = vpack.c.b16 %v516, %v513
      %v589 = vpack.c.b16 %v517, %v514
      %v590 = vpack.c.b16 %v518, %v515
      %v591 = vpack.c.b16 %v522, %v519
      %v592 = vpack.c.b16 %v523, %v520
      %v593 = vpack.c.b16 %v524, %v521
      %v594 = vpack.c.b16 %v528, %v525
      %v595 = vpack.c.b16 %v529, %v526
      %v596 = vpack.c.b16 %v530, %v527
      %v597 = vpack.c.b16 %v534, %v531
      %v598 = vpack.c.b16 %v535, %v532
      %v599 = vpack.c.b16 %v536, %v533
      %v600 = vpack.c.b16 %v540, %v537
      %v601 = vpack.c.b16 %v541, %v538
      %v602 = vpack.c.b16 %v542, %v539
      %v603 = vpack.c.b16 %v546, %v543
      %v604 = vpack.c.b16 %v547, %v544
      %v605 = vpack.c.b16 %v548, %v545
      %v606 = vpack.c.b16 %v552, %v549
      %v607 = vpack.c.b16 %v553, %v550
      %v608 = vpack.c.b16 %v554, %v551
      %v609 = vpack.c.b16 %v558, %v555
      %v610 = vpack.c.b16 %v559, %v556
      %v611 = vpack.c.b16 %v560, %v557
      %v612 = vpack.c.b16 %v564, %v561
      %v613 = vpack.c.b16 %v565, %v562
      %v614 = vpack.c.b16 %v566, %v563
      %v711 = vunpack.c.l.b16 %v359
      %v712 = vunpack.c.l.b16 %v360
      %v713 = vunpack.c.l.b16 %v361
      %v714 = vunpack.c.l.b16 %v362
      %v715 = vunpack.c.l.b16 %v363
      %v716 = vunpack.c.l.b16 %v364
      %v717 = vunpack.c.l.b16 %v365
      %v718 = vunpack.c.l.b16 %v366
      %v719 = vunpack.c.l.b16 %v367
      %v720 = vunpack.c.l.b16 %v368
      %v721 = vunpack.c.l.b16 %v369
      %v722 = vunpack.c.l.b16 %v370
      %v723 = vunpack.c.l.b16 %v371
      %v724 = vunpack.c.l.b16 %v372
      %v725 = vunpack.c.l.b16 %v373
      %v726 = vunpack.c.l.b16 %v374
      %v727 = vunpack.c.l.b16 %v375
      %v728 = vunpack.c.l.b16 %v376
      %v729 = vunpack.c.l.b16 %v377
      %v730 = vunpack.c.l.b16 %v378
      %v731 = vunpack.c.l.b16 %v379
      %v732 = vunpack.c.l.b16 %v380
      %v733 = vunpack.c.l.b16 %v381
      %v734 = vunpack.c.l.b16 %v382
      %v735 = vunpack.c.l.b16 %v383
      %v736 = vunpack.c.l.b16 %v384
      %v737 = vunpack.c.l.b16 %v385
      %v738 = vunpack.c.l.b16 %v386
      %v739 = vunpack.c.l.b16 %v387
      %v740 = vunpack.c.l.b16 %v388
      %v741 = vunpack.c.l.b16 %v389
      %v742 = vunpack.c.l.b16 %v390
      %v743 = vunpack.c.l.b16 %v391
      %v744 = vunpack.c.l.b16 %v392
      %v745 = vunpack.c.l.b16 %v393
      %v746 = vunpack.c.l.b16 %v394
      %v747 = vunpack.c.l.b16 %v395
      %v748 = vunpack.c.l.b16 %v396
      %v749 = vunpack.c.l.b16 %v397
      %v750 = vunpack.c.l.b16 %v398
      %v751 = vunpack.c.l.b16 %v399
      %v752 = vunpack.c.l.b16 %v400
      %v753 = vunpack.c.l.b16 %v401
      %v754 = vunpack.c.l.b16 %v402
      %v755 = vunpack.c.l.b16 %v403
      %v756 = vunpack.c.l.b16 %v404
      %v757 = vunpack.c.l.b16 %v405
      %v758 = vunpack.c.l.b16 %v406
      %v759 = vpack.c.b16 %v712, %v711
      %v760 = vpack.c.b16 %v714, %v713
      %v761 = vpack.c.b16 %v716, %v715
      %v762 = vpack.c.b16 %v718, %v717
      %v763 = vpack.c.b16 %v720, %v719
      %v764 = vpack.c.b16 %v722, %v721
      %v765 = vpack.c.b16 %v724, %v723
      %v766 = vpack.c.b16 %v726, %v725
      %v767 = vpack.c.b16 %v728, %v727
      %v768 = vpack.c.b16 %v730, %v729
      %v769 = vpack.c.b16 %v732, %v731
      %v770 = vpack.c.b16 %v734, %v733
      %v771 = vpack.c.b16 %v736, %v735
      %v772 = vpack.c.b16 %v738, %v737
      %v773 = vpack.c.b16 %v740, %v739
      %v774 = vpack.c.b16 %v742, %v741
      %v775 = vpack.c.b16 %v744, %v743
      %v776 = vpack.c.b16 %v746, %v745
      %v777 = vpack.c.b16 %v748, %v747
      %v778 = vpack.c.b16 %v750, %v749
      %v779 = vpack.c.b16 %v752, %v751
      %v780 = vpack.c.b16 %v754, %v753
      %v781 = vpack.c.b16 %v756, %v755
      %v782 = vpack.c.b16 %v758, %v757
      %807 = vmatprep.subr.bf16.mxu0 0
      %808 = vmatpush1.bf16.msra.mxu0 %v759
      %809 = vmatprep.subr.bf16.mxu0 0
      %810 = vmatpush1.bf16.msra.mxu0 %v760
      %811 = vmatprep.subr.bf16.mxu0 0
      %812 = vmatpush1.bf16.msra.mxu0 %v761
      %813 = vmatprep.subr.bf16.mxu0 0
      %814 = vmatpush1.bf16.msra.mxu0 %v762
      %815 = vmatprep.subr.bf16.mxu0 0
      %816 = vmatpush1.bf16.msra.mxu0 %v763
      %817 = vmatprep.subr.bf16.mxu0 0
      %818 = vmatpush1.bf16.msra.mxu0 %v764
      %819 = vmatprep.subr.bf16.mxu0 0
      %820 = vmatpush1.bf16.msra.mxu0 %v765
      %821 = vmatprep.subr.bf16.mxu0 0
      %822 = vmatpush1.bf16.msra.mxu0 %v766
      %823 = vmatprep.subr.bf16.mxu0 0
      %824 = vmatpush1.bf16.msra.mxu0 %v767
      %825 = vmatprep.subr.bf16.mxu0 0
      %826 = vmatpush1.bf16.msra.mxu0 %v768
      %827 = vmatprep.subr.bf16.mxu0 0
      %828 = vmatpush1.bf16.msra.mxu0 %v769
      %829 = vmatprep.subr.bf16.mxu0 0
      %830 = vmatpush1.bf16.msra.mxu0 %v770
      %831 = vmatprep.subr.bf16.mxu0 0
      %832 = vmatpush1.bf16.msra.mxu0 %v771
      %833 = vmatprep.subr.bf16.mxu0 0
      %834 = vmatpush1.bf16.msra.mxu0 %v772
      %835 = vmatprep.subr.bf16.mxu0 0
      %836 = vmatpush1.bf16.msra.mxu0 %v773
      %837 = vmatprep.subr.bf16.mxu0 0
      %838 = vmatpush1.bf16.msra.mxu0 %v774
      %839 = vmatprep.mubr.bf16.mxu0 %v568
      %840 = vmatmul.mubr.bf16.gmra.mrb[0].mxu0 %v567
      %v841 = vpop.f32.mrb[0].mxu0
      %v842 = vadd.f32 0.0, %v841
      %v843 = vpop.f32.mrb[0].mxu0
      %v844 = vpop.f32.mrb[0].mxu0
      %v845 = vadd.f32 0.0, %v844
      %v846 = vpop.f32.mrb[0].mxu0
      %847 = vmatprep.mubr.bf16.mxu0 %v571
      %848 = vmatmul.mubr.bf16.gmra.mrb[0].mxu0 %v570
      %v849 = vpop.f32.mrb[0].mxu0
      %v850 = vadd.f32 0.0, %v849
      %v851 = vpop.f32.mrb[0].mxu0
      %v852 = vpop.f32.mrb[0].mxu0
      %v853 = vadd.f32 0.0, %v852
      %v854 = vpop.f32.mrb[0].mxu0
      %855 = vmatprep.mubr.bf16.mxu0 %v574
      %856 = vmatmul.mubr.bf16.gmra.mrb[0].mxu0 %v573
      %v857 = vpop.f32.mrb[0].mxu0
      %v858 = vadd.f32 0.0, %v857
      %v859 = vpop.f32.mrb[0].mxu0
      %v860 = vpop.f32.mrb[0].mxu0
      %v861 = vadd.f32 0.0, %v860
      %v862 = vpop.f32.mrb[0].mxu0
      %863 = vmatprep.mubr.bf16.mxu0 %v577
      %864 = vmatmul.mubr.bf16.gmra.mrb[0].mxu0 %v576
      %v865 = vpop.f32.mrb[0].mxu0
      %v866 = vadd.f32 0.0, %v865
      %v867 = vpop.f32.mrb[0].mxu0
      %v868 = vpop.f32.mrb[0].mxu0
      %v869 = vadd.f32 0.0, %v868
      %v870 = vpop.f32.mrb[0].mxu0
      %871 = vmatprep.mubr.bf16.mxu0 %v580
      %872 = vmatmul.mubr.bf16.gmra.mrb[0].mxu0 %v579
      %v873 = vpop.f32.mrb[0].mxu0
      %v874 = vadd.f32 0.0, %v873
      %v875 = vpop.f32.mrb[0].mxu0
      %v876 = vpop.f32.mrb[0].mxu0
      %v877 = vadd.f32 0.0, %v876
      %v878 = vpop.f32.mrb[0].mxu0
      %879 = vmatprep.mubr.bf16.mxu0 %v583
      %880 = vmatmul.mubr.bf16.gmra.mrb[0].mxu0 %v582
      %v881 = vpop.f32.mrb[0].mxu0
      %v882 = vadd.f32 0.0, %v881
      %v883 = vpop.f32.mrb[0].mxu0
      %v884 = vpop.f32.mrb[0].mxu0
      %v885 = vadd.f32 0.0, %v884
      %v886 = vpop.f32.mrb[0].mxu0
      %887 = vmatprep.mubr.bf16.mxu0 %v586
      %888 = vmatmul.mubr.bf16.gmra.mrb[0].mxu0 %v585
      %v889 = vpop.f32.mrb[0].mxu0
      %v890 = vadd.f32 0.0, %v889
      %v891 = vpop.f32.mrb[0].mxu0
      %v892 = vpop.f32.mrb[0].mxu0
      %v893 = vadd.f32 0.0, %v892
      %v894 = vpop.f32.mrb[0].mxu0
      %895 = vmatprep.mubr.bf16.mxu0 %v589
      %896 = vmatmul.mubr.bf16.gmra.mrb[0].mxu0 %v588
      %v897 = vpop.f32.mrb[0].mxu0
      %v898 = vadd.f32 0.0, %v897
      %v899 = vpop.f32.mrb[0].mxu0
      %v900 = vpop.f32.mrb[0].mxu0
      %v901 = vadd.f32 0.0, %v900
      %v902 = vpop.f32.mrb[0].mxu0
      %903 = vmatprep.mubr.bf16.mxu0 %v592
      %904 = vmatmul.mubr.bf16.gmra.mrb[0].mxu0 %v591
      %v905 = vpop.f32.mrb[0].mxu0
      %v906 = vadd.f32 0.0, %v905
      %v907 = vpop.f32.mrb[0].mxu0
      %v908 = vpop.f32.mrb[0].mxu0
      %v909 = vadd.f32 0.0, %v908
      %v910 = vpop.f32.mrb[0].mxu0
      %911 = vmatprep.mubr.bf16.mxu0 %v595
      %912 = vmatmul.mubr.bf16.gmra.mrb[0].mxu0 %v594
      %v913 = vpop.f32.mrb[0].mxu0
      %v914 = vadd.f32 0.0, %v913
      %v915 = vpop.f32.mrb[0].mxu0
      %v916 = vpop.f32.mrb[0].mxu0
      %v917 = vadd.f32 0.0, %v916
      %v918 = vpop.f32.mrb[0].mxu0
      %919 = vmatprep.mubr.bf16.mxu0 %v598
      %920 = vmatmul.mubr.bf16.gmra.mrb[0].mxu0 %v597
      %v921 = vpop.f32.mrb[0].mxu0
      %v922 = vadd.f32 0.0, %v921
      %v923 = vpop.f32.mrb[0].mxu0
      %v924 = vpop.f32.mrb[0].mxu0
      %v925 = vadd.f32 0.0, %v924
      %v926 = vpop.f32.mrb[0].mxu0
      %927 = vmatprep.mubr.bf16.mxu0 %v601
      %928 = vmatmul.mubr.bf16.gmra.mrb[0].mxu0 %v600
      %v929 = vpop.f32.mrb[0].mxu0
      %v930 = vadd.f32 0.0, %v929
      %v931 = vpop.f32.mrb[0].mxu0
      %v932 = vpop.f32.mrb[0].mxu0
      %v933 = vadd.f32 0.0, %v932
      %v934 = vpop.f32.mrb[0].mxu0
      %935 = vmatprep.mubr.bf16.mxu0 %v604
      %936 = vmatmul.mubr.bf16.gmra.mrb[0].mxu0 %v603
      %v937 = vpop.f32.mrb[0].mxu0
      %v938 = vadd.f32 0.0, %v937
      %v939 = vpop.f32.mrb[0].mxu0
      %v940 = vpop.f32.mrb[0].mxu0
      %v941 = vadd.f32 0.0, %v940
      %v942 = vpop.f32.mrb[0].mxu0
      %943 = vmatprep.mubr.bf16.mxu0 %v607
      %944 = vmatmul.mubr.bf16.gmra.mrb[0].mxu0 %v606
      %v945 = vpop.f32.mrb[0].mxu0
      %v946 = vadd.f32 0.0, %v945
      %v947 = vpop.f32.mrb[0].mxu0
      %v948 = vpop.f32.mrb[0].mxu0
      %v949 = vadd.f32 0.0, %v948
      %v950 = vpop.f32.mrb[0].mxu0
      %951 = vmatprep.mubr.bf16.mxu0 %v610
      %952 = vmatmul.mubr.bf16.gmra.mrb[0].mxu0 %v609
      %v953 = vpop.f32.mrb[0].mxu0
      %v954 = vadd.f32 0.0, %v953
      %v955 = vpop.f32.mrb[0].mxu0
      %v956 = vpop.f32.mrb[0].mxu0
      %v957 = vadd.f32 0.0, %v956
      %v958 = vpop.f32.mrb[0].mxu0
      %959 = vmatprep.mubr.bf16.mxu0 %v613
      %960 = vmatmul.mubr.bf16.gmra.mrb[0].mxu0 %v612
      %v961 = vpop.f32.mrb[0].mxu0
      %v962 = vadd.f32 0.0, %v961
      %v963 = vpop.f32.mrb[0].mxu0
      %v964 = vpop.f32.mrb[0].mxu0
      %v965 = vadd.f32 0.0, %v964
      %v966 = vpop.f32.mrb[0].mxu0
      %967 = vdwg.mxu0
      %968 = vmatprep.subr.bf16.mxu0 0
      %969 = vmatpush1.bf16.msra.mxu0 %v775
      %970 = vmatprep.subr.bf16.mxu0 0
      %971 = vmatpush1.bf16.msra.mxu0 %v776
      %972 = vmatprep.subr.bf16.mxu0 0
      %973 = vmatpush1.bf16.msra.mxu0 %v777
      %974 = vmatprep.subr.bf16.mxu0 0
      %975 = vmatpush1.bf16.msra.mxu0 %v778
      %976 = vmatprep.subr.bf16.mxu0 0
      %977 = vmatpush1.bf16.msra.mxu0 %v779
      %978 = vmatprep.subr.bf16.mxu0 0
      %979 = vmatpush1.bf16.msra.mxu0 %v780
      %980 = vmatprep.subr.bf16.mxu0 0
      %981 = vmatpush1.bf16.msra.mxu0 %v781
      %982 = vmatprep.subr.bf16.mxu0 0
      %983 = vmatpush1.bf16.msra.mxu0 %v782
      %984 = vmatprep.subr.bf16.mxu0 0
      %985 = vmatpush1.bf16.msra.mxu0 0
      %986 = vmatprep.subr.bf16.mxu0 0
      %987 = vmatpush1.bf16.msra.mxu0 0
      %988 = vmatprep.subr.bf16.mxu0 0
      %989 = vmatpush1.bf16.msra.mxu0 0
      %990 = vmatprep.subr.bf16.mxu0 0
      %991 = vmatpush1.bf16.msra.mxu0 0
      %992 = vmatprep.subr.bf16.mxu0 0
      %993 = vmatpush1.bf16.msra.mxu0 0
      %994 = vmatprep.subr.bf16.mxu0 0
      %995 = vmatpush1.bf16.msra.mxu0 0
      %996 = vmatprep.subr.bf16.mxu0 0
      %997 = vmatpush1.bf16.msra.mxu0 0
      %998 = vmatprep.subr.bf16.mxu0 0
      %999 = vmatpush1.bf16.msra.mxu0 0
      %1000 = vmatprep.mubr.bf16.mxu0 0
      %1001 = vmatmul.mubr.bf16.gmra.mrb[0].mxu0 %v569
      %v1002 = vpop.f32.mrb[0].mxu0
      %v1003 = vadd.f32 %v842, %v1002
      %v1004 = vpop.f32.mrb[0].mxu0
      %v1005 = vpop.f32.mrb[0].mxu0
      %v1006 = vadd.f32 %v845, %v1005
      %v1007 = vpop.f32.mrb[0].mxu0
      %1008 = vmatprep.mubr.bf16.mxu0 0
      %1009 = vmatmul.mubr.bf16.gmra.mrb[0].mxu0 %v572
      %v1010 = vpop.f32.mrb[0].mxu0
      %v1011 = vadd.f32 %v850, %v1010
      %v1012 = vpop.f32.mrb[0].mxu0
      %v1013 = vpop.f32.mrb[0].mxu0
      %v1014 = vadd.f32 %v853, %v1013
      %v1015 = vpop.f32.mrb[0].mxu0
      %1016 = vmatprep.mubr.bf16.mxu0 0
      %1017 = vmatmul.mubr.bf16.gmra.mrb[0].mxu0 %v575
      %v1018 = vpop.f32.mrb[0].mxu0
      %v1019 = vadd.f32 %v858, %v1018
      %v1020 = vpop.f32.mrb[0].mxu0
      %v1021 = vpop.f32.mrb[0].mxu0
      %v1022 = vadd.f32 %v861, %v1021
      %v1023 = vpop.f32.mrb[0].mxu0
      %1024 = vmatprep.mubr.bf16.mxu0 0
      %1025 = vmatmul.mubr.bf16.gmra.mrb[0].mxu0 %v578
      %v1026 = vpop.f32.mrb[0].mxu0
      %v1027 = vadd.f32 %v866, %v1026
      %v1028 = vpop.f32.mrb[0].mxu0
      %v1029 = vpop.f32.mrb[0].mxu0
      %v1030 = vadd.f32 %v869, %v1029
      %v1031 = vpop.f32.mrb[0].mxu0
      %1032 = vmatprep.mubr.bf16.mxu0 0
      %1033 = vmatmul.mubr.bf16.gmra.mrb[0].mxu0 %v581
      %v1034 = vpop.f32.mrb[0].mxu0
      %v1035 = vadd.f32 %v874, %v1034
      %v1036 = vpop.f32.mrb[0].mxu0
      %v1037 = vpop.f32.mrb[0].mxu0
      %v1038 = vadd.f32 %v877, %v1037
      %v1039 = vpop.f32.mrb[0].mxu0
      %1040 = vmatprep.mubr.bf16.mxu0 0
      %1041 = vmatmul.mubr.bf16.gmra.mrb[0].mxu0 %v584
      %v1042 = vpop.f32.mrb[0].mxu0
      %v1043 = vadd.f32 %v882, %v1042
      %v1044 = vpop.f32.mrb[0].mxu0
      %v1045 = vpop.f32.mrb[0].mxu0
      %v1046 = vadd.f32 %v885, %v1045
      %v1047 = vpop.f32.mrb[0].mxu0
      %1048 = vmatprep.mubr.bf16.mxu0 0
      %1049 = vmatmul.mubr.bf16.gmra.mrb[0].mxu0 %v587
      %v1050 = vpop.f32.mrb[0].mxu0
      %v1051 = vadd.f32 %v890, %v1050
      %v1052 = vpop.f32.mrb[0].mxu0
      %v1053 = vpop.f32.mrb[0].mxu0
      %v1054 = vadd.f32 %v893, %v1053
      %v1055 = vpop.f32.mrb[0].mxu0
      %1056 = vmatprep.mubr.bf16.mxu0 0
      %1057 = vmatmul.mubr.bf16.gmra.mrb[0].mxu0 %v590
      %v1058 = vpop.f32.mrb[0].mxu0
      %v1059 = vadd.f32 %v898, %v1058
      %v1060 = vpop.f32.mrb[0].mxu0
      %v1061 = vpop.f32.mrb[0].mxu0
      %v1062 = vadd.f32 %v901, %v1061
      %v1063 = vpop.f32.mrb[0].mxu0
      %1064 = vmatprep.mubr.bf16.mxu0 0
      %1065 = vmatmul.mubr.bf16.gmra.mrb[0].mxu0 %v593
      %v1066 = vpop.f32.mrb[0].mxu0
      %v1067 = vadd.f32 %v906, %v1066
      %v1068 = vpop.f32.mrb[0].mxu0
      %v1069 = vpop.f32.mrb[0].mxu0
      %v1070 = vadd.f32 %v909, %v1069
      %v1071 = vpop.f32.mrb[0].mxu0
      %1072 = vmatprep.mubr.bf16.mxu0 0
      %1073 = vmatmul.mubr.bf16.gmra.mrb[0].mxu0 %v596
      %v1074 = vpop.f32.mrb[0].mxu0
      %v1075 = vadd.f32 %v914, %v1074
      %v1076 = vpop.f32.mrb[0].mxu0
      %v1077 = vpop.f32.mrb[0].mxu0
      %v1078 = vadd.f32 %v917, %v1077
      %v1079 = vpop.f32.mrb[0].mxu0
      %1080 = vmatprep.mubr.bf16.mxu0 0
      %1081 = vmatmul.mubr.bf16.gmra.mrb[0].mxu0 %v599
      %v1082 = vpop.f32.mrb[0].mxu0
      %v1083 = vadd.f32 %v922, %v1082
      %v1084 = vpop.f32.mrb[0].mxu0
      %v1085 = vpop.f32.mrb[0].mxu0
      %v1086 = vadd.f32 %v925, %v1085
      %v1087 = vpop.f32.mrb[0].mxu0
      %1088 = vmatprep.mubr.bf16.mxu0 0
      %1089 = vmatmul.mubr.bf16.gmra.mrb[0].mxu0 %v602
      %v1090 = vpop.f32.mrb[0].mxu0
      %v1091 = vadd.f32 %v930, %v1090
      %v1092 = vpop.f32.mrb[0].mxu0
      %v1093 = vpop.f32.mrb[0].mxu0
      %v1094 = vadd.f32 %v933, %v1093
      %v1095 = vpop.f32.mrb[0].mxu0
      %1096 = vmatprep.mubr.bf16.mxu0 0
      %1097 = vmatmul.mubr.bf16.gmra.mrb[0].mxu0 %v605
      %v1098 = vpop.f32.mrb[0].mxu0
      %v1099 = vadd.f32 %v938, %v1098
      %v1100 = vpop.f32.mrb[0].mxu0
      %v1101 = vpop.f32.mrb[0].mxu0
      %v1102 = vadd.f32 %v941, %v1101
      %v1103 = vpop.f32.mrb[0].mxu0
      %1104 = vmatprep.mubr.bf16.mxu0 0
      %1105 = vmatmul.mubr.bf16.gmra.mrb[0].mxu0 %v608
      %v1106 = vpop.f32.mrb[0].mxu0
      %v1107 = vadd.f32 %v946, %v1106
      %v1108 = vpop.f32.mrb[0].mxu0
      %v1109 = vpop.f32.mrb[0].mxu0
      %v1110 = vadd.f32 %v949, %v1109
      %v1111 = vpop.f32.mrb[0].mxu0
      %1112 = vmatprep.mubr.bf16.mxu0 0
      %1113 = vmatmul.mubr.bf16.gmra.mrb[0].mxu0 %v611
      %v1114 = vpop.f32.mrb[0].mxu0
      %v1115 = vadd.f32 %v954, %v1114
      %v1116 = vpop.f32.mrb[0].mxu0
      %v1117 = vpop.f32.mrb[0].mxu0
      %v1118 = vadd.f32 %v957, %v1117
      %v1119 = vpop.f32.mrb[0].mxu0
      %1120 = vmatprep.mubr.bf16.mxu0 0
      %1121 = vmatmul.mubr.bf16.gmra.mrb[0].mxu0 %v614
      %v1122 = vpop.f32.mrb[0].mxu0
      %v1123 = vadd.f32 %v962, %v1122
      %v1124 = vpop.f32.mrb[0].mxu0
      %v1125 = vpop.f32.mrb[0].mxu0
      %v1126 = vadd.f32 %v965, %v1125
      %v1127 = vpop.f32.mrb[0].mxu0
      %1128 = vdwg.mxu0
      %v1129 = vadd.f32 %v263, %v1003
      %v1130 = vadd.f32 %v264, %v1006
      %v1131 = vadd.f32 %v265, %v1011
      %v1132 = vadd.f32 %v266, %v1014
      %v1133 = vadd.f32 %v267, %v1019
      %v1134 = vadd.f32 %v268, %v1022
      %v1135 = vadd.f32 %v269, %v1027
      %v1136 = vadd.f32 %v270, %v1030
      %v1137 = vadd.f32 %v271, %v1035
      %v1138 = vadd.f32 %v272, %v1038
      %v1139 = vadd.f32 %v273, %v1043
      %v1140 = vadd.f32 %v274, %v1046
      %v1141 = vadd.f32 %v275, %v1051
      %v1142 = vadd.f32 %v276, %v1054
      %v1143 = vadd.f32 %v277, %v1059
      %v1144 = vadd.f32 %v278, %v1062
      %v1145 = vadd.f32 %v279, %v1067
      %v1146 = vadd.f32 %v280, %v1070
      %v1147 = vadd.f32 %v281, %v1075
      %v1148 = vadd.f32 %v282, %v1078
      %v1149 = vadd.f32 %v283, %v1083
      %v1150 = vadd.f32 %v284, %v1086
      %v1151 = vadd.f32 %v285, %v1091
      %v1152 = vadd.f32 %v286, %v1094
      %v1153 = vadd.f32 %v287, %v1099
      %v1154 = vadd.f32 %v288, %v1102
      %v1155 = vadd.f32 %v289, %v1107
      %v1156 = vadd.f32 %v290, %v1110
      %v1157 = vadd.f32 %v291, %v1115
      %v1158 = vadd.f32 %v292, %v1118
      %v1159 = vadd.f32 %v293, %v1123
      %v1160 = vadd.f32 %v294, %v1126
      %1161 = vst [vmem:[#allocation2] sm:$0xff] %v1129
      %1162 = vst [vmem:[#allocation2 + $0x8] sm:$0xff] %v1130
      %1163 = vst [vmem:[#allocation2 + $0x10] sm:$0xff] %v1131
      %1164 = vst [vmem:[#allocation2 + $0x18] sm:$0xff] %v1132
      %1165 = vst [vmem:[#allocation2 + $0x20] sm:$0xff] %v1133
      %1166 = vst [vmem:[#allocation2 + $0x28] sm:$0xff] %v1134
      %1167 = vst [vmem:[#allocation2 + $0x30] sm:$0xff] %v1135
      %1168 = vst [vmem:[#allocation2 + $0x38] sm:$0xff] %v1136
      %1169 = vst [vmem:[#allocation2 + $0x40] sm:$0xff] %v1137
      %1170 = vst [vmem:[#allocation2 + $0x48] sm:$0xff] %v1138
      %1171 = vst [vmem:[#allocation2 + $0x50] sm:$0xff] %v1139
      %1172 = vst [vmem:[#allocation2 + $0x58] sm:$0xff] %v1140
      %1173 = vst [vmem:[#allocation2 + $0x60] sm:$0xff] %v1141
      %1174 = vst [vmem:[#allocation2 + $0x68] sm:$0xff] %v1142
      %1175 = vst [vmem:[#allocation2 + $0x70] sm:$0xff] %v1143
      %1176 = vst [vmem:[#allocation2 + $0x78] sm:$0xff] %v1144
      %1177 = vst [vmem:[#allocation2 + $0x80] sm:$0xff] %v1145
      %1178 = vst [vmem:[#allocation2 + $0x88] sm:$0xff] %v1146
      %1179 = vst [vmem:[#allocation2 + $0x90] sm:$0xff] %v1147
      %1180 = vst [vmem:[#allocation2 + $0x98] sm:$0xff] %v1148
      %1181 = vst [vmem:[#allocation2 + $0xa0] sm:$0xff] %v1149
      %1182 = vst [vmem:[#allocation2 + $0xa8] sm:$0xff] %v1150
      %1183 = vst [vmem:[#allocation2 + $0xb0] sm:$0xff] %v1151
      %1184 = vst [vmem:[#allocation2 + $0xb8] sm:$0xff] %v1152
      %1185 = vst [vmem:[#allocation2 + $0xc0] sm:$0xff] %v1153
      %1186 = vst [vmem:[#allocation2 + $0xc8] sm:$0xff] %v1154
      %1187 = vst [vmem:[#allocation2 + $0xd0] sm:$0xff] %v1155
      %1188 = vst [vmem:[#allocation2 + $0xd8] sm:$0xff] %v1156
      %1189 = vst [vmem:[#allocation2 + $0xe0] sm:$0xff] %v1157
      %1190 = vst [vmem:[#allocation2 + $0xe8] sm:$0xff] %v1158
      %1191 = vst [vmem:[#allocation2 + $0xf0] sm:$0xff] %v1159
      %1192 = vst [vmem:[#allocation2 + $0xf8] sm:$0xff] %v1160
      // Predicated region
      $region33: #{forward.4} parent=27 // pred_check
        %p1193 = pneg %p227
      $region34: #{forward.4} parent=27 // pred_check_branch
        %1195 = sbr.rel (%p1193) target = $region36
      $region35: #{forward.4} parent=27 // pred_region
        %v1196 = vld [vmem:[#allocation2] sm:$0xff]
        %v1197 = vld [vmem:[#allocation2 + $0x8] sm:$0xff]
        %v1198 = vld [vmem:[#allocation2 + $0x10] sm:$0xff]
        %v1199 = vld [vmem:[#allocation2 + $0x18] sm:$0xff]
        %v1200 = vld [vmem:[#allocation2 + $0x20] sm:$0xff]
        %v1201 = vld [vmem:[#allocation2 + $0x28] sm:$0xff]
        %v1202 = vld [vmem:[#allocation2 + $0x30] sm:$0xff]
        %v1203 = vld [vmem:[#allocation2 + $0x38] sm:$0xff]
        %v1204 = vld [vmem:[#allocation2 + $0x40] sm:$0xff]
        %v1205 = vld [vmem:[#allocation2 + $0x48] sm:$0xff]
        %v1206 = vld [vmem:[#allocation2 + $0x50] sm:$0xff]
        %v1207 = vld [vmem:[#allocation2 + $0x58] sm:$0xff]
        %v1208 = vld [vmem:[#allocation2 + $0x60] sm:$0xff]
        %v1209 = vld [vmem:[#allocation2 + $0x68] sm:$0xff]
        %v1210 = vld [vmem:[#allocation2 + $0x70] sm:$0xff]
        %v1211 = vld [vmem:[#allocation2 + $0x78] sm:$0xff]
        %v1212 = vld [vmem:[#allocation2 + $0x80] sm:$0xff]
        %v1213 = vld [vmem:[#allocation2 + $0x88] sm:$0xff]
        %v1214 = vld [vmem:[#allocation2 + $0x90] sm:$0xff]
        %v1215 = vld [vmem:[#allocation2 + $0x98] sm:$0xff]
        %v1216 = vld [vmem:[#allocation2 + $0xa0] sm:$0xff]
        %v1217 = vld [vmem:[#allocation2 + $0xa8] sm:$0xff]
        %v1218 = vld [vmem:[#allocation2 + $0xb0] sm:$0xff]
        %v1219 = vld [vmem:[#allocation2 + $0xb8] sm:$0xff]
        %v1220 = vld [vmem:[#allocation2 + $0xc0] sm:$0xff]
        %v1221 = vld [vmem:[#allocation2 + $0xc8] sm:$0xff]
        %v1222 = vld [vmem:[#allocation2 + $0xd0] sm:$0xff]
        %v1223 = vld [vmem:[#allocation2 + $0xd8] sm:$0xff]
        %v1224 = vld [vmem:[#allocation2 + $0xe0] sm:$0xff]
        %v1225 = vld [vmem:[#allocation2 + $0xe8] sm:$0xff]
        %v1226 = vld [vmem:[#allocation2 + $0xf0] sm:$0xff]
        %v1227 = vld [vmem:[#allocation2 + $0xf8] sm:$0xff]
        %1228 = vst [vmem:[%s224] sm:$0xff] %v1196
        %1229 = vst [vmem:[%s224 + $0x8] sm:$0xff] %v1197
        %1230 = vst [vmem:[%s224 + $0x10] sm:$0xff] %v1198
        %1231 = vst [vmem:[%s224 + $0x18] sm:$0xff] %v1199
        %1232 = vst [vmem:[%s224 + $0x20] sm:$0xff] %v1200
        %1233 = vst [vmem:[%s224 + $0x28] sm:$0xff] %v1201
        %1234 = vst [vmem:[%s224 + $0x30] sm:$0xff] %v1202
        %1235 = vst [vmem:[%s224 + $0x38] sm:$0xff] %v1203
        %1236 = vst [vmem:[%s224 + $0x40] sm:$0xff] %v1204
        %1237 = vst [vmem:[%s224 + $0x48] sm:$0xff] %v1205
        %1238 = vst [vmem:[%s224 + $0x50] sm:$0xff] %v1206
        %1239 = vst [vmem:[%s224 + $0x58] sm:$0xff] %v1207
        %1240 = vst [vmem:[%s224 + $0x60] sm:$0xff] %v1208
        %1241 = vst [vmem:[%s224 + $0x68] sm:$0xff] %v1209
        %1242 = vst [vmem:[%s224 + $0x70] sm:$0xff] %v1210
        %1243 = vst [vmem:[%s224 + $0x78] sm:$0xff] %v1211
        %1244 = vst [vmem:[%s224 + $0x80] sm:$0xff] %v1212
        %1245 = vst [vmem:[%s224 + $0x88] sm:$0xff] %v1213
        %1246 = vst [vmem:[%s224 + $0x90] sm:$0xff] %v1214
        %1247 = vst [vmem:[%s224 + $0x98] sm:$0xff] %v1215
        %1248 = vst [vmem:[%s224 + $0xa0] sm:$0xff] %v1216
        %1249 = vst [vmem:[%s224 + $0xa8] sm:$0xff] %v1217
        %1250 = vst [vmem:[%s224 + $0xb0] sm:$0xff] %v1218
        %1251 = vst [vmem:[%s224 + $0xb8] sm:$0xff] %v1219
        %1252 = vst [vmem:[%s224 + $0xc0] sm:$0xff] %v1220
        %1253 = vst [vmem:[%s224 + $0xc8] sm:$0xff] %v1221
        %1254 = vst [vmem:[%s224 + $0xd0] sm:$0xff] %v1222
        %1255 = vst [vmem:[%s224 + $0xd8] sm:$0xff] %v1223
        %1256 = vst [vmem:[%s224 + $0xe0] sm:$0xff] %v1224
        %1257 = vst [vmem:[%s224 + $0xe8] sm:$0xff] %v1225
        %1258 = vst [vmem:[%s224 + $0xf0] sm:$0xff] %v1226
        %1259 = vst [vmem:[%s224 + $0xf8] sm:$0xff] %v1227
      $region36: #{forward.4} parent=27 // pred_fallthru
        _
      %s1260 = smul.u32 32, %s18
      %p1261 = scmp.lt.s32.totalorder %s1260, 63
      %s1262 = scalar_select %p1261, %s1260, 63
      %p1263 = scmp.lt.s32.totalorder %s19, 0
      %s1264 = scalar_select %p1263, %s19, 0
      %s1265 = sadd.s32 %s1264, %s1262
      %s1266 = smul.addr %s1265, 8
      %s1267 = scalar_lea.vmem %s2, %s1266
      // Predicated region
      $region37: #{forward.4} parent=27 // pred_check
        %p1268 = pneg %p108
      $region38: #{forward.4} parent=27 // pred_check_branch
        %1270 = sbr.rel (%p1268) target = $region40
      $region39: #{forward.4} parent=27 // pred_region
        %s1271 = smul.u32 32, %s18
      $region40: #{forward.4} parent=27 // pred_fallthru
        _
    $region28: #{forward.4} parent=5 // pred_fallthru
      _
    %p1272 = scmp.le.s32.totalorder 2, %s8
    // Predicated region
    $region41: #{forward.4} parent=5 // pred_check
      %p1273 = pneg %p1272
    $region42: #{forward.4} parent=5 // pred_check_branch
      %1275 = sbr.rel (%p1273) target = $region44
    $region43: #{forward.4} parent=5 // pred_region
      %s1276 = ssub.s32 %s8, 2
      // Predicated region
      $region45: #{forward.4} parent=43 // pred_check
        %p1277 = pneg %p114
      $region46: #{forward.4} parent=43 // pred_check_branch
        %1279 = sbr.rel (%p1277) target = $region48
      $region47: #{forward.4} parent=43 // pred_region
        %s1280 = smul.u32 32, %s21
        %p1281 = scmp.lt.s32.totalorder %s1280, 63
        %s1282 = scalar_select %p1281, %s1280, 63
        %p1283 = scmp.lt.s32.totalorder %s22, 0
        %s1284 = scalar_select %p1283, %s22, 0
        %s1285 = sadd.s32 %s1284, %s1282
        %s1286 = smul.addr %s1285, 8
        %s1287 = scalar_lea.vmem %s2, %s1286
      $region48: #{forward.4} parent=43 // pred_fallthru
        _
    $region44: #{forward.4} parent=5 // pred_fallthru
      _
  $region6: #{forward.4} parent=0 // loop_footer
    %s12 = sadd.s32 1, %s8
  $region7: #{forward.4} parent=0 // loop_footer_branch
    %7 = sbr.rel target = $region3
  $region8: #{forward.4} parent=0 // loop_exit
    _

// kernel: forward.5
$region0: #{forward.5}
  #allocation0 [shape = 'u32[]', space=smem, size = 0x4, offset = 0x4, fixed_abs, tag = 'smem constant byte address 0x4 - core index']
  #allocation1 [shape = 'u32[144,128]{1,0:T(1,128)}', space=vmem, size = 0x12000, scoped, tag = 'internal scratch']
  %s0 = inlined_call_operand.vmem [shape: f32[2,256,128], index: 0, kind: input, shape index: {}]
  %s1 = inlined_call_operand.vmem [shape: f32[1,1,128], index: 1, kind: input, shape index: {}]
  %s2 = inlined_call_operand.vmem [shape: f32[1,1,128], index: 2, kind: input, shape index: {}]
  %s3 = inlined_call_operand.vmem [shape: f32[2,256,128], index: 3, kind: output, shape index: {}]
  %s4 = sld [smem:[#allocation0]]
  $region45: #{forward.5} parent=0
    _
  %s6 = ssub.s32 1, %s4
  %s7 = scalar_select 0, %s6, %s4
  loop: start=0, step=1, limit=4
  $region2: #{forward.5} parent=0 // loop_pre_header
    _
  $region3: #{forward.5} parent=0 // loop_header
    %s9 = sphi 0, %s13
    %p10 = scmp.ge.s32.totalorder %s9, 4
    %s16 = sphi 0, %s28
    %s17 = sphi 0, %s24
    %s18 = sphi 0, %s16
    %s19 = sphi 0, %s17
    %s20 = sphi 0, %s18
    %s21 = sphi 0, %s19
    %s33 = sphi 0, %s35
    %s36 = sphi 0, %s33
    %s37 = sphi 0, %s36
    %s53 = sphi 0, %s37
    %s59 = sphi 0, %s61
    %s62 = sphi 0, %s59
    %s63 = sphi 0, %s62
    %s79 = sphi 0, %s63
    %s85 = sphi 0, %s87
    %s88 = sphi 0, %s85
    %s89 = sphi 0, %s88
    %s105 = sphi 0, %s89
    %s113 = sphi 0, %s115
    %s116 = sphi 0, %s113
    %s117 = sphi 0, %s116
    %s133 = sphi 0, %s117
  $region4: #{forward.5} parent=0 // loop_header_branch
    %12 = sbr.rel (%p10) target = $region8
  $region5: #{forward.5} parent=0 // loop_body
    %s14 = ssub.s32 %s9, 1
    %s15 = ssub.s32 %s9, 2
    %s22 = sadd.s32 1, %s17
    %p23 = scmp.ge.s32.totalorder %s22, 1
    %s24 = scalar_select %p23, 0, %s22
    %s25 = sadd.s32 1, %s16
    %s26 = scalar_select %p23, %s25, %s16
    %p27 = scmp.ge.s32.totalorder %s26, 2
    %s28 = scalar_select %p27, 0, %s26
    %s29 = ssub.s32 %s16, %s28
    %s30 = ssub.s32 %s17, %s24
    %s31 = sor.u32 %s29, %s30
    %p32 = scmp.eq.s32.totalorder %s31, 0
    %s34 = sadd.s32 %s33, 1
    %s35 = scalar_select %p32, %s33, %s34
    %p38 = pneg %p32
    %p39 = scmp.eq.s32.totalorder %s9, 1
    %p40 = por %p38, %p39
    %p41 = scmp.ne.s32.totalorder %s33, %s36
    %p42 = scmp.eq.s32.totalorder %s9, 0
    %p43 = por %p41, %p42
    %p44 = scmp.ne.s32.totalorder %s33, %s36
    %p45 = scmp.eq.s32.totalorder %s14, 1
    %p46 = por %p44, %p45
    %p47 = scmp.ne.s32.totalorder %s36, %s37
    %p48 = scmp.eq.s32.totalorder %s14, 0
    %p49 = por %p47, %p48
    %p50 = scmp.ne.s32.totalorder %s36, %s37
    %p51 = scmp.eq.s32.totalorder %s15, 1
    %p52 = por %p50, %p51
    %p54 = scmp.ne.s32.totalorder %s37, %s53
    %p55 = scmp.eq.s32.totalorder %s15, 0
    %p56 = por %p54, %p55
    %s57 = ssub.s32 %s17, %s24
    %p58 = scmp.eq.s32.totalorder %s57, 0
    %s60 = sadd.s32 %s59, 1
    %s61 = scalar_select %p58, %s59, %s60
    %p64 = pneg %p58
    %p65 = scmp.eq.s32.totalorder %s9, 1
    %p66 = por %p64, %p65
    %p67 = scmp.ne.s32.totalorder %s59, %s62
    %p68 = scmp.eq.s32.totalorder %s9, 0
    %p69 = por %p67, %p68
    %p70 = scmp.ne.s32.totalorder %s59, %s62
    %p71 = scmp.eq.s32.totalorder %s14, 1
    %p72 = por %p70, %p71
    %p73 = scmp.ne.s32.totalorder %s62, %s63
    %p74 = scmp.eq.s32.totalorder %s14, 0
    %p75 = por %p73, %p74
    %p76 = scmp.ne.s32.totalorder %s62, %s63
    %p77 = scmp.eq.s32.totalorder %s15, 1
    %p78 = por %p76, %p77
    %p80 = scmp.ne.s32.totalorder %s63, %s79
    %p81 = scmp.eq.s32.totalorder %s15, 0
    %p82 = por %p80, %p81
    %s83 = ssub.s32 %s17, %s24
    %p84 = scmp.eq.s32.totalorder %s83, 0
    %s86 = sadd.s32 %s85, 1
    %s87 = scalar_select %p84, %s85, %s86
    %p90 = pneg %p84
    %p91 = scmp.eq.s32.totalorder %s9, 1
    %p92 = por %p90, %p91
    %p93 = scmp.ne.s32.totalorder %s85, %s88
    %p94 = scmp.eq.s32.totalorder %s9, 0
    %p95 = por %p93, %p94
    %p96 = scmp.ne.s32.totalorder %s85, %s88
    %p97 = scmp.eq.s32.totalorder %s14, 1
    %p98 = por %p96, %p97
    %p99 = scmp.ne.s32.totalorder %s88, %s89
    %p100 = scmp.eq.s32.totalorder %s14, 0
    %p101 = por %p99, %p100
    %p102 = scmp.ne.s32.totalorder %s88, %s89
    %p103 = scmp.eq.s32.totalorder %s15, 1
    %p104 = por %p102, %p103
    %p106 = scmp.ne.s32.totalorder %s89, %s105
    %p107 = scmp.eq.s32.totalorder %s15, 0
    %p108 = por %p106, %p107
    %s109 = ssub.s32 %s16, %s28
    %s110 = ssub.s32 %s17, %s24
    %s111 = sor.u32 %s109, %s110
    %p112 = scmp.eq.s32.totalorder %s111, 0
    %s114 = sadd.s32 %s113, 1
    %s115 = scalar_select %p112, %s113, %s114
    %p118 = pneg %p112
    %p119 = scmp.eq.s32.totalorder %s9, 1
    %p120 = por %p118, %p119
    %p121 = scmp.ne.s32.totalorder %s113, %s116
    %p122 = scmp.eq.s32.totalorder %s9, 0
    %p123 = por %p121, %p122
    %p124 = scmp.ne.s32.totalorder %s113, %s116
    %p125 = scmp.eq.s32.totalorder %s14, 1
    %p126 = por %p124, %p125
    %p127 = scmp.ne.s32.totalorder %s116, %s117
    %p128 = scmp.eq.s32.totalorder %s14, 0
    %p129 = por %p127, %p128
    %p130 = scmp.ne.s32.totalorder %s116, %s117
    %p131 = scmp.eq.s32.totalorder %s15, 1
    %p132 = por %p130, %p131
    %p134 = scmp.ne.s32.totalorder %s117, %s133
    %p135 = scmp.eq.s32.totalorder %s15, 0
    %p136 = por %p134, %p135
    %p137 = scmp.le.s32.totalorder 1, %s9
    %p138 = scmp.lt.s32.totalorder %s9, 3
    %p139 = pnand %p137, %p138
    %p140 = pneg %p139
    // Predicated region
    $region9: #{forward.5} parent=5 // pred_check
      _
    $region10: #{forward.5} parent=5 // pred_check_branch
      %142 = sbr.rel (%p139) target = $region12
    $region11: #{forward.5} parent=5 // pred_region
      %s143 = ssub.s32 %s9, 1
      // Predicated region
      $region13: #{forward.5} parent=11 // pred_check
        %p144 = pneg %p75
      $region14: #{forward.5} parent=11 // pred_check_branch
        %146 = sbr.rel (%p144) target = $region16
      $region15: #{forward.5} parent=11 // pred_region
        %p147 = scmp.lt.s32.totalorder %s19, 0
        %s148 = scalar_select %p147, %s19, 0
        %s149 = scalar_lea.vmem %s1, %s148
      $region16: #{forward.5} parent=11 // pred_fallthru
        _
      // Predicated region
      $region17: #{forward.5} parent=11 // pred_check
        %p150 = pneg %p101
      $region18: #{forward.5} parent=11 // pred_check_branch
        %152 = sbr.rel (%p150) target = $region20
      $region19: #{forward.5} parent=11 // pred_region
        %p153 = scmp.lt.s32.totalorder %s19, 0
        %s154 = scalar_select %p153, %s19, 0
        %s155 = scalar_lea.vmem %s2, %s154
      $region20: #{forward.5} parent=11 // pred_fallthru
        _
    $region12: #{forward.5} parent=5 // pred_fallthru
      _
    %p156 = scmp.lt.s32.totalorder %s9, 2
    // Predicated region
    $region21: #{forward.5} parent=5 // pred_check
      %p157 = pneg %p156
    $region22: #{forward.5} parent=5 // pred_check_branch
      %159 = sbr.rel (%p157) target = $region24
    $region23: #{forward.5} parent=5 // pred_region
      // Predicated region
      $region25: #{forward.5} parent=23 // pred_check
        %p160 = pneg %p43
      $region26: #{forward.5} parent=23 // pred_check_branch
        %162 = sbr.rel (%p160) target = $region28
      $region27: #{forward.5} parent=23 // pred_region
        %p163 = scmp.lt.s32.totalorder %s16, 1
        %s164 = scalar_select %p163, %s16, 1
        %p165 = scmp.lt.s32.totalorder %s17, 0
        %s166 = scalar_select %p165, %s17, 0
        %s167 = smul.addr %s164, 32
        %s168 = sadd.s32 %s166, %s167
        %s169 = smul.addr %s168, 8
        %s170 = scalar_lea.vmem %s0, %s169
      $region28: #{forward.5} parent=23 // pred_fallthru
        _
    $region24: #{forward.5} parent=5 // pred_fallthru
      _
    %p171 = scmp.le.s32.totalorder 1, %s9
    %p172 = scmp.lt.s32.totalorder %s9, 3
    %p173 = pnand %p171, %p172
    %p174 = pneg %p173
    // Predicated region
    $region29: #{forward.5} parent=5 // pred_check
      _
    $region30: #{forward.5} parent=5 // pred_check_branch
      %176 = sbr.rel (%p173) target = $region32
    $region31: #{forward.5} parent=5 // pred_region
      %s177 = ssub.s32 %s9, 1
      %p178 = scmp.lt.s32.totalorder %s18, 1
      %s179 = scalar_select %p178, %s18, 1
      %p180 = scmp.lt.s32.totalorder %s19, 0
      %s181 = scalar_select %p180, %s19, 0
      %s182 = smul.addr %s179, 32
      %s183 = sadd.s32 %s181, %s182
      %s184 = smul.addr %s183, 8
      %s185 = scalar_lea.vmem %s0, %s184
      %p186 = pneg %p49
      %p187 = pneg %p46
      %p188 = scmp.lt.s32.totalorder %s19, 0
      %s189 = scalar_select %p188, %s19, 0
      %s190 = scalar_lea.vmem %s1, %s189
      %p191 = pneg %p75
      %p192 = pneg %p72
      %p193 = scmp.lt.s32.totalorder %s19, 0
      %s194 = scalar_select %p193, %s19, 0
      %s195 = scalar_lea.vmem %s2, %s194
      %p196 = pneg %p101
      %p197 = pneg %p98
      %p198 = pneg %p129
      %p199 = pneg %p126
      %p200 = scmp.lt.s32.totalorder %s18, 1
      %s201 = scalar_select %p200, %s18, 1
      %p202 = scmp.lt.s32.totalorder %s19, 0
      %s203 = scalar_select %p202, %s19, 0
      %s204 = smul.addr %s201, 32
      %s205 = sadd.s32 %s203, %s204
      %s206 = smul.addr %s205, 8
      %s207 = scalar_lea.vmem %s3, %s206
      %p208 = scmp.lt.s32.totalorder %s18, 1
      %s209 = scalar_select %p208, %s18, 1
      %p210 = scmp.lt.s32.totalorder %s19, 0
      %s211 = scalar_select %p210, %s19, 0
      %s212 = smul.addr %s209, 32
      %s213 = sadd.s32 %s211, %s212
      %s214 = smul.addr %s213, 8
      %s215 = scalar_lea.vmem %s0, %s214
      %p216 = scmp.lt.s32.totalorder %s19, 0
      %s217 = scalar_select %p216, %s19, 0
      %s218 = scalar_lea.vmem %s1, %s217
      %p219 = scmp.lt.s32.totalorder %s19, 0
      %s220 = scalar_select %p219, %s19, 0
      %s221 = scalar_lea.vmem %s2, %s220
      %p222 = scmp.lt.s32.totalorder %s18, 1
      %s223 = scalar_select %p222, %s18, 1
      %p224 = scmp.lt.s32.totalorder %s19, 0
      %s225 = scalar_select %p224, %s19, 0
      %s226 = smul.addr %s223, 32
      %s227 = sadd.s32 %s225, %s226
      %s228 = smul.addr %s227, 8
      %s229 = scalar_lea.vmem %s3, %s228
      %v230 = vld [vmem:[%s215] sm:$0xff]
      %v231 = vld [vmem:[%s215 + $0x8] sm:$0xff]
      %v232 = vld [vmem:[%s215 + $0x10] sm:$0xff]
      %v233 = vld [vmem:[%s215 + $0x18] sm:$0xff]
      %v234 = vld [vmem:[%s215 + $0x20] sm:$0xff]
      %v235 = vld [vmem:[%s215 + $0x28] sm:$0xff]
      %v236 = vld [vmem:[%s215 + $0x30] sm:$0xff]
      %v237 = vld [vmem:[%s215 + $0x38] sm:$0xff]
      %v238 = vld [vmem:[%s215 + $0x40] sm:$0xff]
      %v239 = vld [vmem:[%s215 + $0x48] sm:$0xff]
      %v240 = vld [vmem:[%s215 + $0x50] sm:$0xff]
      %v241 = vld [vmem:[%s215 + $0x58] sm:$0xff]
      %v242 = vld [vmem:[%s215 + $0x60] sm:$0xff]
      %v243 = vld [vmem:[%s215 + $0x68] sm:$0xff]
      %v244 = vld [vmem:[%s215 + $0x70] sm:$0xff]
      %v245 = vld [vmem:[%s215 + $0x78] sm:$0xff]
      %v246 = vld [vmem:[%s215 + $0x80] sm:$0xff]
      %v247 = vld [vmem:[%s215 + $0x88] sm:$0xff]
      %v248 = vld [vmem:[%s215 + $0x90] sm:$0xff]
      %v249 = vld [vmem:[%s215 + $0x98] sm:$0xff]
      %v250 = vld [vmem:[%s215 + $0xa0] sm:$0xff]
      %v251 = vld [vmem:[%s215 + $0xa8] sm:$0xff]
      %v252 = vld [vmem:[%s215 + $0xb0] sm:$0xff]
      %v253 = vld [vmem:[%s215 + $0xb8] sm:$0xff]
      %v254 = vld [vmem:[%s215 + $0xc0] sm:$0xff]
      %v255 = vld [vmem:[%s215 + $0xc8] sm:$0xff]
      %v256 = vld [vmem:[%s215 + $0xd0] sm:$0xff]
      %v257 = vld [vmem:[%s215 + $0xd8] sm:$0xff]
      %v258 = vld [vmem:[%s215 + $0xe0] sm:$0xff]
      %v259 = vld [vmem:[%s215 + $0xe8] sm:$0xff]
      %v260 = vld [vmem:[%s215 + $0xf0] sm:$0xff]
      %v261 = vld [vmem:[%s215 + $0xf8] sm:$0xff]
      %v262 = vld [vmem:[%s218] sm:$0x1]
      %v263 = vld [vmem:[%s221] sm:$0x1]
      %v264 = vadd.f32 %v230, %v231
      %v265 = vadd.f32 %v264, %v232
      %v266 = vadd.f32 %v265, %v233
      %v267 = vadd.f32 %v266, %v234
      %v268 = vadd.f32 %v267, %v235
      %v269 = vadd.f32 %v268, %v236
      %v270 = vadd.f32 %v269, %v237
      %v271 = vadd.f32 %v270, %v238
      %v272 = vadd.f32 %v271, %v239
      %v273 = vadd.f32 %v272, %v240
      %v274 = vadd.f32 %v273, %v241
      %v275 = vadd.f32 %v274, %v242
      %v276 = vadd.f32 %v275, %v243
      %v277 = vadd.f32 %v276, %v244
      %v278 = vadd.f32 %v277, %v245
      %v279 = vadd.f32 %v278, %v246
      %v280 = vadd.f32 %v279, %v247
      %v281 = vadd.f32 %v280, %v248
      %v282 = vadd.f32 %v281, %v249
      %v283 = vadd.f32 %v282, %v250
      %v284 = vadd.f32 %v283, %v251
      %v285 = vadd.f32 %v284, %v252
      %v286 = vadd.f32 %v285, %v253
      %v287 = vadd.f32 %v286, %v254
      %v288 = vadd.f32 %v287, %v255
      %v289 = vadd.f32 %v288, %v256
      %v290 = vadd.f32 %v289, %v257
      %v291 = vadd.f32 %v290, %v258
      %v292 = vadd.f32 %v291, %v259
      %v293 = vadd.f32 %v292, %v260
      %v294 = vadd.f32 %v293, %v261
      %v295 = vrot.slane %v294, 4
      %v296 = vadd.f32 %v294, %v295
      %v297 = vrot.slane %v296, 2
      %v298 = vadd.f32 %v296, %v297
      %v299 = vrot.slane %v298, 1
      %v300 = vadd.f32 %v298, %v299
      %v301 = vrcp.pop 256.0
      %v302 = vmul.f32 %v300, %v301
      %v303 = vsub.f32 %v230, %v302
      %v304 = vsub.f32 %v231, %v302
      %v305 = vsub.f32 %v232, %v302
      %v306 = vsub.f32 %v233, %v302
      %v307 = vsub.f32 %v234, %v302
      %v308 = vsub.f32 %v235, %v302
      %v309 = vsub.f32 %v236, %v302
      %v310 = vsub.f32 %v237, %v302
      %v311 = vsub.f32 %v238, %v302
      %v312 = vsub.f32 %v239, %v302
      %v313 = vsub.f32 %v240, %v302
      %v314 = vsub.f32 %v241, %v302
      %v315 = vsub.f32 %v242, %v302
      %v316 = vsub.f32 %v243, %v302
      %v317 = vsub.f32 %v244, %v302
      %v318 = vsub.f32 %v245, %v302
      %v319 = vsub.f32 %v246, %v302
      %v320 = vsub.f32 %v247, %v302
      %v321 = vsub.f32 %v248, %v302
      %v322 = vsub.f32 %v249, %v302
      %v323 = vsub.f32 %v250, %v302
      %v324 = vsub.f32 %v251, %v302
      %v325 = vsub.f32 %v252, %v302
      %v326 = vsub.f32 %v253, %v302
      %v327 = vsub.f32 %v254, %v302
      %v328 = vsub.f32 %v255, %v302
      %v329 = vsub.f32 %v256, %v302
      %v330 = vsub.f32 %v257, %v302
      %v331 = vsub.f32 %v258, %v302
      %v332 = vsub.f32 %v259, %v302
      %v333 = vsub.f32 %v260, %v302
      %v334 = vsub.f32 %v261, %v302
      %v335 = vmul.f32 %v303, %v303
      %v336 = vmul.f32 %v304, %v304
      %v337 = vmul.f32 %v305, %v305
      %v338 = vmul.f32 %v306, %v306
      %v339 = vmul.f32 %v307, %v307
      %v340 = vmul.f32 %v308, %v308
      %v341 = vmul.f32 %v309, %v309
      %v342 = vmul.f32 %v310, %v310
      %v343 = vmul.f32 %v311, %v311
      %v344 = vmul.f32 %v312, %v312
      %v345 = vmul.f32 %v313, %v313
      %v346 = vmul.f32 %v314, %v314
      %v347 = vmul.f32 %v315, %v315
      %v348 = vmul.f32 %v316, %v316
      %v349 = vmul.f32 %v317, %v317
      %v350 = vmul.f32 %v318, %v318
      %v351 = vmul.f32 %v319, %v319
      %v352 = vmul.f32 %v320, %v320
      %v353 = vmul.f32 %v321, %v321
      %v354 = vmul.f32 %v322, %v322
      %v355 = vmul.f32 %v323, %v323
      %v356 = vmul.f32 %v324, %v324
      %v357 = vmul.f32 %v325, %v325
      %v358 = vmul.f32 %v326, %v326
      %v359 = vmul.f32 %v327, %v327
      %v360 = vmul.f32 %v328, %v328
      %v361 = vmul.f32 %v329, %v329
      %v362 = vmul.f32 %v330, %v330
      %v363 = vmul.f32 %v331, %v331
      %v364 = vmul.f32 %v332, %v332
      %v365 = vmul.f32 %v333, %v333
      %v366 = vmul.f32 %v334, %v334
      %v367 = vadd.f32 %v335, %v336
      %v368 = vadd.f32 %v367, %v337
      %v369 = vadd.f32 %v368, %v338
      %v370 = vadd.f32 %v369, %v339
      %v371 = vadd.f32 %v370, %v340
      %v372 = vadd.f32 %v371, %v341
      %v373 = vadd.f32 %v372, %v342
      %v374 = vadd.f32 %v373, %v343
      %v375 = vadd.f32 %v374, %v344
      %v376 = vadd.f32 %v375, %v345
      %v377 = vadd.f32 %v376, %v346
      %v378 = vadd.f32 %v377, %v347
      %v379 = vadd.f32 %v378, %v348
      %v380 = vadd.f32 %v379, %v349
      %v381 = vadd.f32 %v380, %v350
      %v382 = vadd.f32 %v381, %v351
      %v383 = vadd.f32 %v382, %v352
      %v384 = vadd.f32 %v383, %v353
      %v385 = vadd.f32 %v384, %v354
      %v386 = vadd.f32 %v385, %v355
      %v387 = vadd.f32 %v386, %v356
      %v388 = vadd.f32 %v387, %v357
      %v389 = vadd.f32 %v388, %v358
      %v390 = vadd.f32 %v389, %v359
      %v391 = vadd.f32 %v390, %v360
      %v392 = vadd.f32 %v391, %v361
      %v393 = vadd.f32 %v392, %v362
      %v394 = vadd.f32 %v393, %v363
      %v395 = vadd.f32 %v394, %v364
      %v396 = vadd.f32 %v395, %v365
      %v397 = vadd.f32 %v396, %v366
      %v398 = vrot.slane %v397, 4
      %v399 = vadd.f32 %v397, %v398
      %v400 = vrot.slane %v399, 2
      %v401 = vadd.f32 %v399, %v400
      %v402 = vrot.slane %v401, 1
      %v403 = vadd.f32 %v401, %v402
      %v404 = vmul.f32 %v403, %v301
      %v405 = vadd.f32 %v404, 1e-05
      %v406 = vrsqrt.pop %v405
      %v407 = vmul.f32 %v303, %v406
      %v408 = vmul.f32 %v304, %v406
      %v409 = vmul.f32 %v305, %v406
      %v410 = vmul.f32 %v306, %v406
      %v411 = vmul.f32 %v307, %v406
      %v412 = vmul.f32 %v308, %v406
      %v413 = vmul.f32 %v309, %v406
      %v414 = vmul.f32 %v310, %v406
      %v415 = vmul.f32 %v311, %v406
      %v416 = vmul.f32 %v312, %v406
      %v417 = vmul.f32 %v313, %v406
      %v418 = vmul.f32 %v314, %v406
      %v419 = vmul.f32 %v315, %v406
      %v420 = vmul.f32 %v316, %v406
      %v421 = vmul.f32 %v317, %v406
      %v422 = vmul.f32 %v318, %v406
      %v423 = vmul.f32 %v319, %v406
      %v424 = vmul.f32 %v320, %v406
      %v425 = vmul.f32 %v321, %v406
      %v426 = vmul.f32 %v322, %v406
      %v427 = vmul.f32 %v323, %v406
      %v428 = vmul.f32 %v324, %v406
      %v429 = vmul.f32 %v325, %v406
      %v430 = vmul.f32 %v326, %v406
      %v431 = vmul.f32 %v327, %v406
      %v432 = vmul.f32 %v328, %v406
      %v433 = vmul.f32 %v329, %v406
      %v434 = vmul.f32 %v330, %v406
      %v435 = vmul.f32 %v331, %v406
      %v436 = vmul.f32 %v332, %v406
      %v437 = vmul.f32 %v333, %v406
      %v438 = vmul.f32 %v334, %v406
      %v440 = vlaneseq
      %v441 = vshrl.u32 %v440, 7
      %v442 = vsub.s32 0, %v441
      %v443 = vrot.slane %v262, %v442
      %v445 = vmul.f32 %v407, %v443
      %v446 = vmul.f32 %v408, %v443
      %v447 = vmul.f32 %v409, %v443
      %v448 = vmul.f32 %v410, %v443
      %v449 = vmul.f32 %v411, %v443
      %v450 = vmul.f32 %v412, %v443
      %v451 = vmul.f32 %v413, %v443
      %v452 = vmul.f32 %v414, %v443
      %v453 = vmul.f32 %v415, %v443
      %v454 = vmul.f32 %v416, %v443
      %v455 = vmul.f32 %v417, %v443
      %v456 = vmul.f32 %v418, %v443
      %v457 = vmul.f32 %v419, %v443
      %v458 = vmul.f32 %v420, %v443
      %v459 = vmul.f32 %v421, %v443
      %v460 = vmul.f32 %v422, %v443
      %v461 = vmul.f32 %v423, %v443
      %v462 = vmul.f32 %v424, %v443
      %v463 = vmul.f32 %v425, %v443
      %v464 = vmul.f32 %v426, %v443
      %v465 = vmul.f32 %v427, %v443
      %v466 = vmul.f32 %v428, %v443
      %v467 = vmul.f32 %v429, %v443
      %v468 = vmul.f32 %v430, %v443
      %v469 = vmul.f32 %v431, %v443
      %v470 = vmul.f32 %v432, %v443
      %v471 = vmul.f32 %v433, %v443
      %v472 = vmul.f32 %v434, %v443
      %v473 = vmul.f32 %v435, %v443
      %v474 = vmul.f32 %v436, %v443
      %v475 = vmul.f32 %v437, %v443
      %v476 = vmul.f32 %v438, %v443
      %v478 = vlaneseq
      %v479 = vshrl.u32 %v478, 7
      %v480 = vsub.s32 0, %v479
      %v481 = vrot.slane %v263, %v480
      %v483 = vadd.f32 %v445, %v481
      %v484 = vadd.f32 %v446, %v481
      %v485 = vadd.f32 %v447, %v481
      %v486 = vadd.f32 %v448, %v481
      %v487 = vadd.f32 %v449, %v481
      %v488 = vadd.f32 %v450, %v481
      %v489 = vadd.f32 %v451, %v481
      %v490 = vadd.f32 %v452, %v481
      %v491 = vadd.f32 %v453, %v481
      %v492 = vadd.f32 %v454, %v481
      %v493 = vadd.f32 %v455, %v481
      %v494 = vadd.f32 %v456, %v481
      %v495 = vadd.f32 %v457, %v481
      %v496 = vadd.f32 %v458, %v481
      %v497 = vadd.f32 %v459, %v481
      %v498 = vadd.f32 %v460, %v481
      %v499 = vadd.f32 %v461, %v481
      %v500 = vadd.f32 %v462, %v481
      %v501 = vadd.f32 %v463, %v481
      %v502 = vadd.f32 %v464, %v481
      %v503 = vadd.f32 %v465, %v481
      %v504 = vadd.f32 %v466, %v481
      %v505 = vadd.f32 %v467, %v481
      %v506 = vadd.f32 %v468, %v481
      %v507 = vadd.f32 %v469, %v481
      %v508 = vadd.f32 %v470, %v481
      %v509 = vadd.f32 %v471, %v481
      %v510 = vadd.f32 %v472, %v481
      %v511 = vadd.f32 %v473, %v481
      %v512 = vadd.f32 %v474, %v481
      %v513 = vadd.f32 %v475, %v481
      %v514 = vadd.f32 %v476, %v481
      %v515 = vmax.f32 %v483, 0.0
      %v516 = vmax.f32 %v484, 0.0
      %v517 = vmax.f32 %v485, 0.0
      %v518 = vmax.f32 %v486, 0.0
      %v519 = vmax.f32 %v487, 0.0
      %v520 = vmax.f32 %v488, 0.0
      %v521 = vmax.f32 %v489, 0.0
      %v522 = vmax.f32 %v490, 0.0
      %v523 = vmax.f32 %v491, 0.0
      %v524 = vmax.f32 %v492, 0.0
      %v525 = vmax.f32 %v493, 0.0
      %v526 = vmax.f32 %v494, 0.0
      %v527 = vmax.f32 %v495, 0.0
      %v528 = vmax.f32 %v496, 0.0
      %v529 = vmax.f32 %v497, 0.0
      %v530 = vmax.f32 %v498, 0.0
      %v531 = vmax.f32 %v499, 0.0
      %v532 = vmax.f32 %v500, 0.0
      %v533 = vmax.f32 %v501, 0.0
      %v534 = vmax.f32 %v502, 0.0
      %v535 = vmax.f32 %v503, 0.0
      %v536 = vmax.f32 %v504, 0.0
      %v537 = vmax.f32 %v505, 0.0
      %v538 = vmax.f32 %v506, 0.0
      %v539 = vmax.f32 %v507, 0.0
      %v540 = vmax.f32 %v508, 0.0
      %v541 = vmax.f32 %v509, 0.0
      %v542 = vmax.f32 %v510, 0.0
      %v543 = vmax.f32 %v511, 0.0
      %v544 = vmax.f32 %v512, 0.0
      %v545 = vmax.f32 %v513, 0.0
      %v546 = vmax.f32 %v514, 0.0
      %547 = vst [vmem:[%s229] sm:$0xff] %v515
      %548 = vst [vmem:[%s229 + $0x8] sm:$0xff] %v516
      %549 = vst [vmem:[%s229 + $0x10] sm:$0xff] %v517
      %550 = vst [vmem:[%s229 + $0x18] sm:$0xff] %v518
      %551 = vst [vmem:[%s229 + $0x20] sm:$0xff] %v519
      %552 = vst [vmem:[%s229 + $0x28] sm:$0xff] %v520
      %553 = vst [vmem:[%s229 + $0x30] sm:$0xff] %v521
      %554 = vst [vmem:[%s229 + $0x38] sm:$0xff] %v522
      %555 = vst [vmem:[%s229 + $0x40] sm:$0xff] %v523
      %556 = vst [vmem:[%s229 + $0x48] sm:$0xff] %v524
      %557 = vst [vmem:[%s229 + $0x50] sm:$0xff] %v525
      %558 = vst [vmem:[%s229 + $0x58] sm:$0xff] %v526
      %559 = vst [vmem:[%s229 + $0x60] sm:$0xff] %v527
      %560 = vst [vmem:[%s229 + $0x68] sm:$0xff] %v528
      %561 = vst [vmem:[%s229 + $0x70] sm:$0xff] %v529
      %562 = vst [vmem:[%s229 + $0x78] sm:$0xff] %v530
      %563 = vst [vmem:[%s229 + $0x80] sm:$0xff] %v531
      %564 = vst [vmem:[%s229 + $0x88] sm:$0xff] %v532
      %565 = vst [vmem:[%s229 + $0x90] sm:$0xff] %v533
      %566 = vst [vmem:[%s229 + $0x98] sm:$0xff] %v534
      %567 = vst [vmem:[%s229 + $0xa0] sm:$0xff] %v535
      %568 = vst [vmem:[%s229 + $0xa8] sm:$0xff] %v536
      %569 = vst [vmem:[%s229 + $0xb0] sm:$0xff] %v537
      %570 = vst [vmem:[%s229 + $0xb8] sm:$0xff] %v538
      %571 = vst [vmem:[%s229 + $0xc0] sm:$0xff] %v539
      %572 = vst [vmem:[%s229 + $0xc8] sm:$0xff] %v540
      %573 = vst [vmem:[%s229 + $0xd0] sm:$0xff] %v541
      %574 = vst [vmem:[%s229 + $0xd8] sm:$0xff] %v542
      %575 = vst [vmem:[%s229 + $0xe0] sm:$0xff] %v543
      %576 = vst [vmem:[%s229 + $0xe8] sm:$0xff] %v544
      %577 = vst [vmem:[%s229 + $0xf0] sm:$0xff] %v545
      %578 = vst [vmem:[%s229 + $0xf8] sm:$0xff] %v546
      %p579 = scmp.lt.s32.totalorder %s18, 1
      %s580 = scalar_select %p579, %s18, 1
      %p581 = scmp.lt.s32.totalorder %s19, 0
      %s582 = scalar_select %p581, %s19, 0
      %s583 = smul.addr %s580, 32
      %s584 = sadd.s32 %s582, %s583
      %s585 = smul.addr %s584, 8
      %s586 = scalar_lea.vmem %s3, %s585
      // Predicated region
      $region33: #{forward.5} parent=31 // pred_check
        %p587 = pneg %p126
      $region34: #{forward.5} parent=31 // pred_check_branch
        %589 = sbr.rel (%p587) target = $region36
      $region35: #{forward.5} parent=31 // pred_region
        _
      $region36: #{forward.5} parent=31 // pred_fallthru
        _
    $region32: #{forward.5} parent=5 // pred_fallthru
      _
    %p590 = scmp.le.s32.totalorder 2, %s9
    // Predicated region
    $region37: #{forward.5} parent=5 // pred_check
      %p591 = pneg %p590
    $region38: #{forward.5} parent=5 // pred_check_branch
      %593 = sbr.rel (%p591) target = $region40
    $region39: #{forward.5} parent=5 // pred_region
      %s594 = ssub.s32 %s9, 2
      // Predicated region
      $region41: #{forward.5} parent=39 // pred_check
        %p595 = pneg %p132
      $region42: #{forward.5} parent=39 // pred_check_branch
        %597 = sbr.rel (%p595) target = $region44
      $region43: #{forward.5} parent=39 // pred_region
        %p598 = scmp.lt.s32.totalorder %s20, 1
        %s599 = scalar_select %p598, %s20, 1
        %p600 = scmp.lt.s32.totalorder %s21, 0
        %s601 = scalar_select %p600, %s21, 0
        %s602 = smul.addr %s599, 32
        %s603 = sadd.s32 %s601, %s602
        %s604 = smul.addr %s603, 8
        %s605 = scalar_lea.vmem %s3, %s604
      $region44: #{forward.5} parent=39 // pred_fallthru
        _
    $region40: #{forward.5} parent=5 // pred_fallthru
      _
  $region6: #{forward.5} parent=0 // loop_footer
    %s13 = sadd.s32 1, %s9
  $region7: #{forward.5} parent=0 // loop_footer_branch
    %8 = sbr.rel target = $region3
  $region8: #{forward.5} parent=0 // loop_exit
    _

// kernel: forward.7
$region0: #{forward.7}
  #allocation0 [shape = 'u32[]', space=smem, size = 0x4, offset = 0x4, fixed_abs, tag = 'smem constant byte address 0x4 - core index']
  #allocation1 [shape = 'u32[144,128]{1,0:T(1,128)}', space=vmem, size = 0x12000, scoped, tag = 'internal scratch']
  %s0 = inlined_call_operand.vmem [shape: f32[2,256,128], index: 0, kind: input, shape index: {}]
  %s1 = inlined_call_operand.vmem [shape: f32[1,1,128], index: 1, kind: input, shape index: {}]
  %s2 = inlined_call_operand.vmem [shape: f32[1,1,128], index: 2, kind: input, shape index: {}]
  %s3 = inlined_call_operand.vmem [shape: f32[2,256,128], index: 3, kind: input, shape index: {}]
  %s4 = inlined_call_operand.hbm [shape: f32[2,256,128], index: 4, kind: output, shape index: {}]
  %s5 = sld [smem:[#allocation0]]
  $region49: #{forward.7} parent=0
    _
  %s7 = ssub.s32 1, %s5
  %s8 = scalar_select 0, %s7, %s5
  $region1: #{forward.7} parent=0
    #allocation2 [shape = 'u8[262144]{0}', space=vmem, size = 0x40000, scoped, tag = 'output window, operand 0']
    #allocation3 [shape = 's32[2]{0}', space=sflag, size = 0x8, scoped, tag = 'scoped memory for forward.7']
    %9 = vsyncpa [#allocation3], 0
    %s10 = scalar_lea.sflag [#allocation3], 1
    %11 = vsyncpa %s10, 0
    loop: start=0, step=1, limit=4
    $region2: #{forward.7} parent=1 // loop_pre_header
      _
    $region3: #{forward.7} parent=1 // loop_header
      %s13 = sphi 0, %s17
      %p14 = scmp.ge.s32.totalorder %s13, 4
      %s20 = sphi 0, %s32
      %s21 = sphi 0, %s28
      %s22 = sphi 0, %s20
      %s23 = sphi 0, %s21
      %s24 = sphi 0, %s22
      %s25 = sphi 0, %s23
      %s37 = sphi 0, %s39
      %s40 = sphi 0, %s37
      %s41 = sphi 0, %s40
      %s57 = sphi 0, %s41
      %s63 = sphi 0, %s65
      %s66 = sphi 0, %s63
      %s67 = sphi 0, %s66
      %s83 = sphi 0, %s67
      %s89 = sphi 0, %s91
      %s92 = sphi 0, %s89
      %s93 = sphi 0, %s92
      %s109 = sphi 0, %s93
      %s117 = sphi 0, %s119
      %s120 = sphi 0, %s117
      %s121 = sphi 0, %s120
      %s137 = sphi 0, %s121
      %s145 = sphi 0, %s147
      %s148 = sphi 0, %s145
      %s149 = sphi 0, %s148
      %s165 = sphi 0, %s149
    $region4: #{forward.7} parent=1 // loop_header_branch
      %16 = sbr.rel (%p14) target = $region8
    $region5: #{forward.7} parent=1 // loop_body
      %s18 = ssub.s32 %s13, 1
      %s19 = ssub.s32 %s13, 2
      %s26 = sadd.s32 1, %s21
      %p27 = scmp.ge.s32.totalorder %s26, 1
      %s28 = scalar_select %p27, 0, %s26
      %s29 = sadd.s32 1, %s20
      %s30 = scalar_select %p27, %s29, %s20
      %p31 = scmp.ge.s32.totalorder %s30, 2
      %s32 = scalar_select %p31, 0, %s30
      %s33 = ssub.s32 %s20, %s32
      %s34 = ssub.s32 %s21, %s28
      %s35 = sor.u32 %s33, %s34
      %p36 = scmp.eq.s32.totalorder %s35, 0
      %s38 = sadd.s32 %s37, 1
      %s39 = scalar_select %p36, %s37, %s38
      %p42 = pneg %p36
      %p43 = scmp.eq.s32.totalorder %s13, 1
      %p44 = por %p42, %p43
      %p45 = scmp.ne.s32.totalorder %s37, %s40
      %p46 = scmp.eq.s32.totalorder %s13, 0
      %p47 = por %p45, %p46
      %p48 = scmp.ne.s32.totalorder %s37, %s40
      %p49 = scmp.eq.s32.totalorder %s18, 1
      %p50 = por %p48, %p49
      %p51 = scmp.ne.s32.totalorder %s40, %s41
      %p52 = scmp.eq.s32.totalorder %s18, 0
      %p53 = por %p51, %p52
      %p54 = scmp.ne.s32.totalorder %s40, %s41
      %p55 = scmp.eq.s32.totalorder %s19, 1
      %p56 = por %p54, %p55
      %p58 = scmp.ne.s32.totalorder %s41, %s57
      %p59 = scmp.eq.s32.totalorder %s19, 0
      %p60 = por %p58, %p59
      %s61 = ssub.s32 %s21, %s28
      %p62 = scmp.eq.s32.totalorder %s61, 0
      %s64 = sadd.s32 %s63, 1
      %s65 = scalar_select %p62, %s63, %s64
      %p68 = pneg %p62
      %p69 = scmp.eq.s32.totalorder %s13, 1
      %p70 = por %p68, %p69
      %p71 = scmp.ne.s32.totalorder %s63, %s66
      %p72 = scmp.eq.s32.totalorder %s13, 0
      %p73 = por %p71, %p72
      %p74 = scmp.ne.s32.totalorder %s63, %s66
      %p75 = scmp.eq.s32.totalorder %s18, 1
      %p76 = por %p74, %p75
      %p77 = scmp.ne.s32.totalorder %s66, %s67
      %p78 = scmp.eq.s32.totalorder %s18, 0
      %p79 = por %p77, %p78
      %p80 = scmp.ne.s32.totalorder %s66, %s67
      %p81 = scmp.eq.s32.totalorder %s19, 1
      %p82 = por %p80, %p81
      %p84 = scmp.ne.s32.totalorder %s67, %s83
      %p85 = scmp.eq.s32.totalorder %s19, 0
      %p86 = por %p84, %p85
      %s87 = ssub.s32 %s21, %s28
      %p88 = scmp.eq.s32.totalorder %s87, 0
      %s90 = sadd.s32 %s89, 1
      %s91 = scalar_select %p88, %s89, %s90
      %p94 = pneg %p88
      %p95 = scmp.eq.s32.totalorder %s13, 1
      %p96 = por %p94, %p95
      %p97 = scmp.ne.s32.totalorder %s89, %s92
      %p98 = scmp.eq.s32.totalorder %s13, 0
      %p99 = por %p97, %p98
      %p100 = scmp.ne.s32.totalorder %s89, %s92
      %p101 = scmp.eq.s32.totalorder %s18, 1
      %p102 = por %p100, %p101
      %p103 = scmp.ne.s32.totalorder %s92, %s93
      %p104 = scmp.eq.s32.totalorder %s18, 0
      %p105 = por %p103, %p104
      %p106 = scmp.ne.s32.totalorder %s92, %s93
      %p107 = scmp.eq.s32.totalorder %s19, 1
      %p108 = por %p106, %p107
      %p110 = scmp.ne.s32.totalorder %s93, %s109
      %p111 = scmp.eq.s32.totalorder %s19, 0
      %p112 = por %p110, %p111
      %s113 = ssub.s32 %s20, %s32
      %s114 = ssub.s32 %s21, %s28
      %s115 = sor.u32 %s113, %s114
      %p116 = scmp.eq.s32.totalorder %s115, 0
      %s118 = sadd.s32 %s117, 1
      %s119 = scalar_select %p116, %s117, %s118
      %p122 = pneg %p116
      %p123 = scmp.eq.s32.totalorder %s13, 1
      %p124 = por %p122, %p123
      %p125 = scmp.ne.s32.totalorder %s117, %s120
      %p126 = scmp.eq.s32.totalorder %s13, 0
      %p127 = por %p125, %p126
      %p128 = scmp.ne.s32.totalorder %s117, %s120
      %p129 = scmp.eq.s32.totalorder %s18, 1
      %p130 = por %p128, %p129
      %p131 = scmp.ne.s32.totalorder %s120, %s121
      %p132 = scmp.eq.s32.totalorder %s18, 0
      %p133 = por %p131, %p132
      %p134 = scmp.ne.s32.totalorder %s120, %s121
      %p135 = scmp.eq.s32.totalorder %s19, 1
      %p136 = por %p134, %p135
      %p138 = scmp.ne.s32.totalorder %s121, %s137
      %p139 = scmp.eq.s32.totalorder %s19, 0
      %p140 = por %p138, %p139
      %s141 = ssub.s32 %s20, %s32
      %s142 = ssub.s32 %s21, %s28
      %s143 = sor.u32 %s141, %s142
      %p144 = scmp.eq.s32.totalorder %s143, 0
      %s146 = sadd.s32 %s145, 1
      %s147 = scalar_select %p144, %s145, %s146
      %p150 = pneg %p144
      %p151 = scmp.eq.s32.totalorder %s13, 1
      %p152 = por %p150, %p151
      %p153 = scmp.ne.s32.totalorder %s145, %s148
      %p154 = scmp.eq.s32.totalorder %s13, 0
      %p155 = por %p153, %p154
      %p156 = scmp.ne.s32.totalorder %s145, %s148
      %p157 = scmp.eq.s32.totalorder %s18, 1
      %p158 = por %p156, %p157
      %p159 = scmp.ne.s32.totalorder %s148, %s149
      %p160 = scmp.eq.s32.totalorder %s18, 0
      %p161 = por %p159, %p160
      %p162 = scmp.ne.s32.totalorder %s148, %s149
      %p163 = scmp.eq.s32.totalorder %s19, 1
      %p164 = por %p162, %p163
      %p166 = scmp.ne.s32.totalorder %s149, %s165
      %p167 = scmp.eq.s32.totalorder %s19, 0
      %p168 = por %p166, %p167
      %p169 = scmp.le.s32.totalorder 1, %s13
      %p170 = scmp.lt.s32.totalorder %s13, 3
      %p171 = pnand %p169, %p170
      %p172 = pneg %p171
      // Predicated region
      $region9: #{forward.7} parent=5 // pred_check
        _
      $region10: #{forward.7} parent=5 // pred_check_branch
        %174 = sbr.rel (%p171) target = $region12
      $region11: #{forward.7} parent=5 // pred_region
        %s175 = ssub.s32 %s13, 1
        // Predicated region
        $region13: #{forward.7} parent=11 // pred_check
          %p176 = pneg %p79
        $region14: #{forward.7} parent=11 // pred_check_branch
          %178 = sbr.rel (%p176) target = $region16
        $region15: #{forward.7} parent=11 // pred_region
          %p179 = scmp.lt.s32.totalorder %s23, 0
          %s180 = scalar_select %p179, %s23, 0
          %s181 = scalar_lea.vmem %s1, %s180
        $region16: #{forward.7} parent=11 // pred_fallthru
          _
        // Predicated region
        $region17: #{forward.7} parent=11 // pred_check
          %p182 = pneg %p105
        $region18: #{forward.7} parent=11 // pred_check_branch
          %184 = sbr.rel (%p182) target = $region20
        $region19: #{forward.7} parent=11 // pred_region
          %p185 = scmp.lt.s32.totalorder %s23, 0
          %s186 = scalar_select %p185, %s23, 0
          %s187 = scalar_lea.vmem %s2, %s186
        $region20: #{forward.7} parent=11 // pred_fallthru
          _
      $region12: #{forward.7} parent=5 // pred_fallthru
        _
      %p188 = scmp.lt.s32.totalorder %s13, 2
      // Predicated region
      $region21: #{forward.7} parent=5 // pred_check
        %p189 = pneg %p188
      $region22: #{forward.7} parent=5 // pred_check_branch
        %191 = sbr.rel (%p189) target = $region24
      $region23: #{forward.7} parent=5 // pred_region
        // Predicated region
        $region25: #{forward.7} parent=23 // pred_check
          %p192 = pneg %p47
        $region26: #{forward.7} parent=23 // pred_check_branch
          %194 = sbr.rel (%p192) target = $region28
        $region27: #{forward.7} parent=23 // pred_region
          %p195 = scmp.lt.s32.totalorder %s20, 1
          %s196 = scalar_select %p195, %s20, 1
          %p197 = scmp.lt.s32.totalorder %s21, 0
          %s198 = scalar_select %p197, %s21, 0
          %s199 = smul.addr %s196, 32
          %s200 = sadd.s32 %s198, %s199
          %s201 = smul.addr %s200, 8
          %s202 = scalar_lea.vmem %s0, %s201
        $region28: #{forward.7} parent=23 // pred_fallthru
          _
        // Predicated region
        $region29: #{forward.7} parent=23 // pred_check
          %p203 = pneg %p127
        $region30: #{forward.7} parent=23 // pred_check_branch
          %205 = sbr.rel (%p203) target = $region32
        $region31: #{forward.7} parent=23 // pred_region
          %p206 = scmp.lt.s32.totalorder %s20, 1
          %s207 = scalar_select %p206, %s20, 1
          %p208 = scmp.lt.s32.totalorder %s21, 0
          %s209 = scalar_select %p208, %s21, 0
          %s210 = smul.addr %s207, 32
          %s211 = sadd.s32 %s209, %s210
          %s212 = smul.addr %s211, 8
          %s213 = scalar_lea.vmem %s3, %s212
        $region32: #{forward.7} parent=23 // pred_fallthru
          _
      $region24: #{forward.7} parent=5 // pred_fallthru
        _
      %p214 = scmp.le.s32.totalorder 1, %s13
      %p215 = scmp.lt.s32.totalorder %s13, 3
      %p216 = pnand %p214, %p215
      %p217 = pneg %p216
      // Predicated region
      $region33: #{forward.7} parent=5 // pred_check
        _
      $region34: #{forward.7} parent=5 // pred_check_branch
        %219 = sbr.rel (%p216) target = $region36
      $region35: #{forward.7} parent=5 // pred_region
        %s220 = ssub.s32 %s13, 1
        %p221 = scmp.lt.s32.totalorder %s22, 1
        %s222 = scalar_select %p221, %s22, 1
        %p223 = scmp.lt.s32.totalorder %s23, 0
        %s224 = scalar_select %p223, %s23, 0
        %s225 = smul.addr %s222, 32
        %s226 = sadd.s32 %s224, %s225
        %s227 = smul.addr %s226, 8
        %s228 = scalar_lea.vmem %s0, %s227
        %p229 = pneg %p53
        %p230 = pneg %p50
        %p231 = scmp.lt.s32.totalorder %s23, 0
        %s232 = scalar_select %p231, %s23, 0
        %s233 = scalar_lea.vmem %s1, %s232
        %p234 = pneg %p79
        %p235 = pneg %p76
        %p236 = scmp.lt.s32.totalorder %s23, 0
        %s237 = scalar_select %p236, %s23, 0
        %s238 = scalar_lea.vmem %s2, %s237
        %p239 = pneg %p105
        %p240 = pneg %p102
        %p241 = scmp.lt.s32.totalorder %s22, 1
        %s242 = scalar_select %p241, %s22, 1
        %p243 = scmp.lt.s32.totalorder %s23, 0
        %s244 = scalar_select %p243, %s23, 0
        %s245 = smul.addr %s242, 32
        %s246 = sadd.s32 %s244, %s245
        %s247 = smul.addr %s246, 8
        %s248 = scalar_lea.vmem %s3, %s247
        %p249 = pneg %p133
        %p250 = pneg %p130
        %p251 = pneg %p161
        %p252 = pneg %p158
        %s253 = sand.u32 %s148, 1
        %s254 = scalar_lea.sflag [#allocation3], %s253
        %s255 = sand.u32 %s148, 1
        %s256 = smul.addr %s255, 256
        %s257 = scalar_lea.vmem [#allocation2], %s256
        %p258 = scmp.lt.s32.totalorder %s22, 1
        %s259 = scalar_select %p258, %s22, 1
        %p260 = scmp.lt.s32.totalorder %s23, 0
        %s261 = scalar_select %p260, %s23, 0
        %s262 = smul.addr %s259, 32
        %s263 = sadd.s32 %s261, %s262
        %s264 = smul.addr %s263, 8
        %s265 = scalar_lea.vmem %s0, %s264
        %p266 = scmp.lt.s32.totalorder %s23, 0
        %s267 = scalar_select %p266, %s23, 0
        %s268 = scalar_lea.vmem %s1, %s267
        %p269 = scmp.lt.s32.totalorder %s23, 0
        %s270 = scalar_select %p269, %s23, 0
        %s271 = scalar_lea.vmem %s2, %s270
        %p272 = scmp.lt.s32.totalorder %s22, 1
        %s273 = scalar_select %p272, %s22, 1
        %p274 = scmp.lt.s32.totalorder %s23, 0
        %s275 = scalar_select %p274, %s23, 0
        %s276 = smul.addr %s273, 32
        %s277 = sadd.s32 %s275, %s276
        %s278 = smul.addr %s277, 8
        %s279 = scalar_lea.vmem %s3, %s278
        %v280 = vld [vmem:[%s265] sm:$0xff]
        %v281 = vld [vmem:[%s265 + $0x8] sm:$0xff]
        %v282 = vld [vmem:[%s265 + $0x10] sm:$0xff]
        %v283 = vld [vmem:[%s265 + $0x18] sm:$0xff]
        %v284 = vld [vmem:[%s265 + $0x20] sm:$0xff]
        %v285 = vld [vmem:[%s265 + $0x28] sm:$0xff]
        %v286 = vld [vmem:[%s265 + $0x30] sm:$0xff]
        %v287 = vld [vmem:[%s265 + $0x38] sm:$0xff]
        %v288 = vld [vmem:[%s265 + $0x40] sm:$0xff]
        %v289 = vld [vmem:[%s265 + $0x48] sm:$0xff]
        %v290 = vld [vmem:[%s265 + $0x50] sm:$0xff]
        %v291 = vld [vmem:[%s265 + $0x58] sm:$0xff]
        %v292 = vld [vmem:[%s265 + $0x60] sm:$0xff]
        %v293 = vld [vmem:[%s265 + $0x68] sm:$0xff]
        %v294 = vld [vmem:[%s265 + $0x70] sm:$0xff]
        %v295 = vld [vmem:[%s265 + $0x78] sm:$0xff]
        %v296 = vld [vmem:[%s265 + $0x80] sm:$0xff]
        %v297 = vld [vmem:[%s265 + $0x88] sm:$0xff]
        %v298 = vld [vmem:[%s265 + $0x90] sm:$0xff]
        %v299 = vld [vmem:[%s265 + $0x98] sm:$0xff]
        %v300 = vld [vmem:[%s265 + $0xa0] sm:$0xff]
        %v301 = vld [vmem:[%s265 + $0xa8] sm:$0xff]
        %v302 = vld [vmem:[%s265 + $0xb0] sm:$0xff]
        %v303 = vld [vmem:[%s265 + $0xb8] sm:$0xff]
        %v304 = vld [vmem:[%s265 + $0xc0] sm:$0xff]
        %v305 = vld [vmem:[%s265 + $0xc8] sm:$0xff]
        %v306 = vld [vmem:[%s265 + $0xd0] sm:$0xff]
        %v307 = vld [vmem:[%s265 + $0xd8] sm:$0xff]
        %v308 = vld [vmem:[%s265 + $0xe0] sm:$0xff]
        %v309 = vld [vmem:[%s265 + $0xe8] sm:$0xff]
        %v310 = vld [vmem:[%s265 + $0xf0] sm:$0xff]
        %v311 = vld [vmem:[%s265 + $0xf8] sm:$0xff]
        %v312 = vld [vmem:[%s268] sm:$0x1]
        %v313 = vld [vmem:[%s271] sm:$0x1]
        %v314 = vadd.f32 %v280, %v281
        %v315 = vadd.f32 %v314, %v282
        %v316 = vadd.f32 %v315, %v283
        %v317 = vadd.f32 %v316, %v284
        %v318 = vadd.f32 %v317, %v285
        %v319 = vadd.f32 %v318, %v286
        %v320 = vadd.f32 %v319, %v287
        %v321 = vadd.f32 %v320, %v288
        %v322 = vadd.f32 %v321, %v289
        %v323 = vadd.f32 %v322, %v290
        %v324 = vadd.f32 %v323, %v291
        %v325 = vadd.f32 %v324, %v292
        %v326 = vadd.f32 %v325, %v293
        %v327 = vadd.f32 %v326, %v294
        %v328 = vadd.f32 %v327, %v295
        %v329 = vadd.f32 %v328, %v296
        %v330 = vadd.f32 %v329, %v297
        %v331 = vadd.f32 %v330, %v298
        %v332 = vadd.f32 %v331, %v299
        %v333 = vadd.f32 %v332, %v300
        %v334 = vadd.f32 %v333, %v301
        %v335 = vadd.f32 %v334, %v302
        %v336 = vadd.f32 %v335, %v303
        %v337 = vadd.f32 %v336, %v304
        %v338 = vadd.f32 %v337, %v305
        %v339 = vadd.f32 %v338, %v306
        %v340 = vadd.f32 %v339, %v307
        %v341 = vadd.f32 %v340, %v308
        %v342 = vadd.f32 %v341, %v309
        %v343 = vadd.f32 %v342, %v310
        %v344 = vadd.f32 %v343, %v311
        %v345 = vrot.slane %v344, 4
        %v346 = vadd.f32 %v344, %v345
        %v347 = vrot.slane %v346, 2
        %v348 = vadd.f32 %v346, %v347
        %v349 = vrot.slane %v348, 1
        %v350 = vadd.f32 %v348, %v349
        %v351 = vrcp.pop 256.0
        %v352 = vmul.f32 %v350, %v351
        %v353 = vsub.f32 %v280, %v352
        %v354 = vsub.f32 %v281, %v352
        %v355 = vsub.f32 %v282, %v352
        %v356 = vsub.f32 %v283, %v352
        %v357 = vsub.f32 %v284, %v352
        %v358 = vsub.f32 %v285, %v352
        %v359 = vsub.f32 %v286, %v352
        %v360 = vsub.f32 %v287, %v352
        %v361 = vsub.f32 %v288, %v352
        %v362 = vsub.f32 %v289, %v352
        %v363 = vsub.f32 %v290, %v352
        %v364 = vsub.f32 %v291, %v352
        %v365 = vsub.f32 %v292, %v352
        %v366 = vsub.f32 %v293, %v352
        %v367 = vsub.f32 %v294, %v352
        %v368 = vsub.f32 %v295, %v352
        %v369 = vsub.f32 %v296, %v352
        %v370 = vsub.f32 %v297, %v352
        %v371 = vsub.f32 %v298, %v352
        %v372 = vsub.f32 %v299, %v352
        %v373 = vsub.f32 %v300, %v352
        %v374 = vsub.f32 %v301, %v352
        %v375 = vsub.f32 %v302, %v352
        %v376 = vsub.f32 %v303, %v352
        %v377 = vsub.f32 %v304, %v352
        %v378 = vsub.f32 %v305, %v352
        %v379 = vsub.f32 %v306, %v352
        %v380 = vsub.f32 %v307, %v352
        %v381 = vsub.f32 %v308, %v352
        %v382 = vsub.f32 %v309, %v352
        %v383 = vsub.f32 %v310, %v352
        %v384 = vsub.f32 %v311, %v352
        %v385 = vmul.f32 %v353, %v353
        %v386 = vmul.f32 %v354, %v354
        %v387 = vmul.f32 %v355, %v355
        %v388 = vmul.f32 %v356, %v356
        %v389 = vmul.f32 %v357, %v357
        %v390 = vmul.f32 %v358, %v358
        %v391 = vmul.f32 %v359, %v359
        %v392 = vmul.f32 %v360, %v360
        %v393 = vmul.f32 %v361, %v361
        %v394 = vmul.f32 %v362, %v362
        %v395 = vmul.f32 %v363, %v363
        %v396 = vmul.f32 %v364, %v364
        %v397 = vmul.f32 %v365, %v365
        %v398 = vmul.f32 %v366, %v366
        %v399 = vmul.f32 %v367, %v367
        %v400 = vmul.f32 %v368, %v368
        %v401 = vmul.f32 %v369, %v369
        %v402 = vmul.f32 %v370, %v370
        %v403 = vmul.f32 %v371, %v371
        %v404 = vmul.f32 %v372, %v372
        %v405 = vmul.f32 %v373, %v373
        %v406 = vmul.f32 %v374, %v374
        %v407 = vmul.f32 %v375, %v375
        %v408 = vmul.f32 %v376, %v376
        %v409 = vmul.f32 %v377, %v377
        %v410 = vmul.f32 %v378, %v378
        %v411 = vmul.f32 %v379, %v379
        %v412 = vmul.f32 %v380, %v380
        %v413 = vmul.f32 %v381, %v381
        %v414 = vmul.f32 %v382, %v382
        %v415 = vmul.f32 %v383, %v383
        %v416 = vmul.f32 %v384, %v384
        %v417 = vadd.f32 %v385, %v386
        %v418 = vadd.f32 %v417, %v387
        %v419 = vadd.f32 %v418, %v388
        %v420 = vadd.f32 %v419, %v389
        %v421 = vadd.f32 %v420, %v390
        %v422 = vadd.f32 %v421, %v391
        %v423 = vadd.f32 %v422, %v392
        %v424 = vadd.f32 %v423, %v393
        %v425 = vadd.f32 %v424, %v394
        %v426 = vadd.f32 %v425, %v395
        %v427 = vadd.f32 %v426, %v396
        %v428 = vadd.f32 %v427, %v397
        %v429 = vadd.f32 %v428, %v398
        %v430 = vadd.f32 %v429, %v399
        %v431 = vadd.f32 %v430, %v400
        %v432 = vadd.f32 %v431, %v401
        %v433 = vadd.f32 %v432, %v402
        %v434 = vadd.f32 %v433, %v403
        %v435 = vadd.f32 %v434, %v404
        %v436 = vadd.f32 %v435, %v405
        %v437 = vadd.f32 %v436, %v406
        %v438 = vadd.f32 %v437, %v407
        %v439 = vadd.f32 %v438, %v408
        %v440 = vadd.f32 %v439, %v409
        %v441 = vadd.f32 %v440, %v410
        %v442 = vadd.f32 %v441, %v411
        %v443 = vadd.f32 %v442, %v412
        %v444 = vadd.f32 %v443, %v413
        %v445 = vadd.f32 %v444, %v414
        %v446 = vadd.f32 %v445, %v415
        %v447 = vadd.f32 %v446, %v416
        %v448 = vrot.slane %v447, 4
        %v449 = vadd.f32 %v447, %v448
        %v450 = vrot.slane %v449, 2
        %v451 = vadd.f32 %v449, %v450
        %v452 = vrot.slane %v451, 1
        %v453 = vadd.f32 %v451, %v452
        %v454 = vmul.f32 %v453, %v351
        %v455 = vadd.f32 %v454, 1e-05
        %v456 = vrsqrt.pop %v455
        %v457 = vmul.f32 %v353, %v456
        %v458 = vmul.f32 %v354, %v456
        %v459 = vmul.f32 %v355, %v456
        %v460 = vmul.f32 %v356, %v456
        %v461 = vmul.f32 %v357, %v456
        %v462 = vmul.f32 %v358, %v456
        %v463 = vmul.f32 %v359, %v456
        %v464 = vmul.f32 %v360, %v456
        %v465 = vmul.f32 %v361, %v456
        %v466 = vmul.f32 %v362, %v456
        %v467 = vmul.f32 %v363, %v456
        %v468 = vmul.f32 %v364, %v456
        %v469 = vmul.f32 %v365, %v456
        %v470 = vmul.f32 %v366, %v456
        %v471 = vmul.f32 %v367, %v456
        %v472 = vmul.f32 %v368, %v456
        %v473 = vmul.f32 %v369, %v456
        %v474 = vmul.f32 %v370, %v456
        %v475 = vmul.f32 %v371, %v456
        %v476 = vmul.f32 %v372, %v456
        %v477 = vmul.f32 %v373, %v456
        %v478 = vmul.f32 %v374, %v456
        %v479 = vmul.f32 %v375, %v456
        %v480 = vmul.f32 %v376, %v456
        %v481 = vmul.f32 %v377, %v456
        %v482 = vmul.f32 %v378, %v456
        %v483 = vmul.f32 %v379, %v456
        %v484 = vmul.f32 %v380, %v456
        %v485 = vmul.f32 %v381, %v456
        %v486 = vmul.f32 %v382, %v456
        %v487 = vmul.f32 %v383, %v456
        %v488 = vmul.f32 %v384, %v456
        %v490 = vlaneseq
        %v491 = vshrl.u32 %v490, 7
        %v492 = vsub.s32 0, %v491
        %v493 = vrot.slane %v312, %v492
        %v495 = vmul.f32 %v457, %v493
        %v496 = vmul.f32 %v458, %v493
        %v497 = vmul.f32 %v459, %v493
        %v498 = vmul.f32 %v460, %v493
        %v499 = vmul.f32 %v461, %v493
        %v500 = vmul.f32 %v462, %v493
        %v501 = vmul.f32 %v463, %v493
        %v502 = vmul.f32 %v464, %v493
        %v503 = vmul.f32 %v465, %v493
        %v504 = vmul.f32 %v466, %v493
        %v505 = vmul.f32 %v467, %v493
        %v506 = vmul.f32 %v468, %v493
        %v507 = vmul.f32 %v469, %v493
        %v508 = vmul.f32 %v470, %v493
        %v509 = vmul.f32 %v471, %v493
        %v510 = vmul.f32 %v472, %v493
        %v511 = vmul.f32 %v473, %v493
        %v512 = vmul.f32 %v474, %v493
        %v513 = vmul.f32 %v475, %v493
        %v514 = vmul.f32 %v476, %v493
        %v515 = vmul.f32 %v477, %v493
        %v516 = vmul.f32 %v478, %v493
        %v517 = vmul.f32 %v479, %v493
        %v518 = vmul.f32 %v480, %v493
        %v519 = vmul.f32 %v481, %v493
        %v520 = vmul.f32 %v482, %v493
        %v521 = vmul.f32 %v483, %v493
        %v522 = vmul.f32 %v484, %v493
        %v523 = vmul.f32 %v485, %v493
        %v524 = vmul.f32 %v486, %v493
        %v525 = vmul.f32 %v487, %v493
        %v526 = vmul.f32 %v488, %v493
        %v528 = vlaneseq
        %v529 = vshrl.u32 %v528, 7
        %v530 = vsub.s32 0, %v529
        %v531 = vrot.slane %v313, %v530
        %v533 = vadd.f32 %v495, %v531
        %v534 = vadd.f32 %v496, %v531
        %v535 = vadd.f32 %v497, %v531
        %v536 = vadd.f32 %v498, %v531
        %v537 = vadd.f32 %v499, %v531
        %v538 = vadd.f32 %v500, %v531
        %v539 = vadd.f32 %v501, %v531
        %v540 = vadd.f32 %v502, %v531
        %v541 = vadd.f32 %v503, %v531
        %v542 = vadd.f32 %v504, %v531
        %v543 = vadd.f32 %v505, %v531
        %v544 = vadd.f32 %v506, %v531
        %v545 = vadd.f32 %v507, %v531
        %v546 = vadd.f32 %v508, %v531
        %v547 = vadd.f32 %v509, %v531
        %v548 = vadd.f32 %v510, %v531
        %v549 = vadd.f32 %v511, %v531
        %v550 = vadd.f32 %v512, %v531
        %v551 = vadd.f32 %v513, %v531
        %v552 = vadd.f32 %v514, %v531
        %v553 = vadd.f32 %v515, %v531
        %v554 = vadd.f32 %v516, %v531
        %v555 = vadd.f32 %v517, %v531
        %v556 = vadd.f32 %v518, %v531
        %v557 = vadd.f32 %v519, %v531
        %v558 = vadd.f32 %v520, %v531
        %v559 = vadd.f32 %v521, %v531
        %v560 = vadd.f32 %v522, %v531
        %v561 = vadd.f32 %v523, %v531
        %v562 = vadd.f32 %v524, %v531
        %v563 = vadd.f32 %v525, %v531
        %v564 = vadd.f32 %v526, %v531
        %v565 = vld [vmem:[%s279] sm:$0xff]
        %v566 = vld [vmem:[%s279 + $0x8] sm:$0xff]
        %v567 = vld [vmem:[%s279 + $0x10] sm:$0xff]
        %v568 = vld [vmem:[%s279 + $0x18] sm:$0xff]
        %v569 = vld [vmem:[%s279 + $0x20] sm:$0xff]
        %v570 = vld [vmem:[%s279 + $0x28] sm:$0xff]
        %v571 = vld [vmem:[%s279 + $0x30] sm:$0xff]
        %v572 = vld [vmem:[%s279 + $0x38] sm:$0xff]
        %v573 = vld [vmem:[%s279 + $0x40] sm:$0xff]
        %v574 = vld [vmem:[%s279 + $0x48] sm:$0xff]
        %v575 = vld [vmem:[%s279 + $0x50] sm:$0xff]
        %v576 = vld [vmem:[%s279 + $0x58] sm:$0xff]
        %v577 = vld [vmem:[%s279 + $0x60] sm:$0xff]
        %v578 = vld [vmem:[%s279 + $0x68] sm:$0xff]
        %v579 = vld [vmem:[%s279 + $0x70] sm:$0xff]
        %v580 = vld [vmem:[%s279 + $0x78] sm:$0xff]
        %v581 = vld [vmem:[%s279 + $0x80] sm:$0xff]
        %v582 = vld [vmem:[%s279 + $0x88] sm:$0xff]
        %v583 = vld [vmem:[%s279 + $0x90] sm:$0xff]
        %v584 = vld [vmem:[%s279 + $0x98] sm:$0xff]
        %v585 = vld [vmem:[%s279 + $0xa0] sm:$0xff]
        %v586 = vld [vmem:[%s279 + $0xa8] sm:$0xff]
        %v587 = vld [vmem:[%s279 + $0xb0] sm:$0xff]
        %v588 = vld [vmem:[%s279 + $0xb8] sm:$0xff]
        %v589 = vld [vmem:[%s279 + $0xc0] sm:$0xff]
        %v590 = vld [vmem:[%s279 + $0xc8] sm:$0xff]
        %v591 = vld [vmem:[%s279 + $0xd0] sm:$0xff]
        %v592 = vld [vmem:[%s279 + $0xd8] sm:$0xff]
        %v593 = vld [vmem:[%s279 + $0xe0] sm:$0xff]
        %v594 = vld [vmem:[%s279 + $0xe8] sm:$0xff]
        %v595 = vld [vmem:[%s279 + $0xf0] sm:$0xff]
        %v596 = vld [vmem:[%s279 + $0xf8] sm:$0xff]
        %v597 = vadd.f32 %v533, %v565
        %v598 = vadd.f32 %v534, %v566
        %v599 = vadd.f32 %v535, %v567
        %v600 = vadd.f32 %v536, %v568
        %v601 = vadd.f32 %v537, %v569
        %v602 = vadd.f32 %v538, %v570
        %v603 = vadd.f32 %v539, %v571
        %v604 = vadd.f32 %v540, %v572
        %v605 = vadd.f32 %v541, %v573
        %v606 = vadd.f32 %v542, %v574
        %v607 = vadd.f32 %v543, %v575
        %v608 = vadd.f32 %v544, %v576
        %v609 = vadd.f32 %v545, %v577
        %v610 = vadd.f32 %v546, %v578
        %v611 = vadd.f32 %v547, %v579
        %v612 = vadd.f32 %v548, %v580
        %v613 = vadd.f32 %v549, %v581
        %v614 = vadd.f32 %v550, %v582
        %v615 = vadd.f32 %v551, %v583
        %v616 = vadd.f32 %v552, %v584
        %v617 = vadd.f32 %v553, %v585
        %v618 = vadd.f32 %v554, %v586
        %v619 = vadd.f32 %v555, %v587
        %v620 = vadd.f32 %v556, %v588
        %v621 = vadd.f32 %v557, %v589
        %v622 = vadd.f32 %v558, %v590
        %v623 = vadd.f32 %v559, %v591
        %v624 = vadd.f32 %v560, %v592
        %v625 = vadd.f32 %v561, %v593
        %v626 = vadd.f32 %v562, %v594
        %v627 = vadd.f32 %v563, %v595
        %v628 = vadd.f32 %v564, %v596
        %629 = vst [vmem:[%s257] sm:$0xff] %v597
        %630 = vst [vmem:[%s257 + $0x8] sm:$0xff] %v598
        %631 = vst [vmem:[%s257 + $0x10] sm:$0xff] %v599
        %632 = vst [vmem:[%s257 + $0x18] sm:$0xff] %v600
        %633 = vst [vmem:[%s257 + $0x20] sm:$0xff] %v601
        %634 = vst [vmem:[%s257 + $0x28] sm:$0xff] %v602
        %635 = vst [vmem:[%s257 + $0x30] sm:$0xff] %v603
        %636 = vst [vmem:[%s257 + $0x38] sm:$0xff] %v604
        %637 = vst [vmem:[%s257 + $0x40] sm:$0xff] %v605
        %638 = vst [vmem:[%s257 + $0x48] sm:$0xff] %v606
        %639 = vst [vmem:[%s257 + $0x50] sm:$0xff] %v607
        %640 = vst [vmem:[%s257 + $0x58] sm:$0xff] %v608
        %641 = vst [vmem:[%s257 + $0x60] sm:$0xff] %v609
        %642 = vst [vmem:[%s257 + $0x68] sm:$0xff] %v610
        %643 = vst [vmem:[%s257 + $0x70] sm:$0xff] %v611
        %644 = vst [vmem:[%s257 + $0x78] sm:$0xff] %v612
        %645 = vst [vmem:[%s257 + $0x80] sm:$0xff] %v613
        %646 = vst [vmem:[%s257 + $0x88] sm:$0xff] %v614
        %647 = vst [vmem:[%s257 + $0x90] sm:$0xff] %v615
        %648 = vst [vmem:[%s257 + $0x98] sm:$0xff] %v616
        %649 = vst [vmem:[%s257 + $0xa0] sm:$0xff] %v617
        %650 = vst [vmem:[%s257 + $0xa8] sm:$0xff] %v618
        %651 = vst [vmem:[%s257 + $0xb0] sm:$0xff] %v619
        %652 = vst [vmem:[%s257 + $0xb8] sm:$0xff] %v620
        %653 = vst [vmem:[%s257 + $0xc0] sm:$0xff] %v621
        %654 = vst [vmem:[%s257 + $0xc8] sm:$0xff] %v622
        %655 = vst [vmem:[%s257 + $0xd0] sm:$0xff] %v623
        %656 = vst [vmem:[%s257 + $0xd8] sm:$0xff] %v624
        %657 = vst [vmem:[%s257 + $0xe0] sm:$0xff] %v625
        %658 = vst [vmem:[%s257 + $0xe8] sm:$0xff] %v626
        %659 = vst [vmem:[%s257 + $0xf0] sm:$0xff] %v627
        %660 = vst [vmem:[%s257 + $0xf8] sm:$0xff] %v628
        %s661 = sand.u32 %s148, 1
        %s662 = scalar_lea.sflag [#allocation3], %s661
        %s663 = sand.u32 %s148, 1
        %s664 = smul.addr %s663, 256
        %s665 = scalar_lea.vmem [#allocation2], %s664
        // Predicated region
        $region37: #{forward.7} parent=35 // pred_check
          %p666 = pneg %p158
        $region38: #{forward.7} parent=35 // pred_check_branch
          %668 = sbr.rel (%p666) target = $region40
        $region39: #{forward.7} parent=35 // pred_region
          %s670 = ssub.s32 4096, 4096
          %671 = vsyncadd %s662, %s670
          %s672 = smul.addr %s22, 32
          %s673 = sadd.s32 %s23, %s672
          %s674 = smul.addr %s673, 128
          %s675 = scalar_lea.hbm %s4, %s674
          %s676 = sshll.u32 %s665, 4
          %s677 = int_to_ptr.vmem [resolvable:$true] %s676
          %682 = dma.vmem_to_hbm [thread:$0]  %s677, 4096, %s675, %s662, 128, 128, 8
        $region40: #{forward.7} parent=35 // pred_fallthru
          _
      $region36: #{forward.7} parent=5 // pred_fallthru
        _
      %p683 = scmp.le.s32.totalorder 2, %s13
      // Predicated region
      $region41: #{forward.7} parent=5 // pred_check
        %p684 = pneg %p683
      $region42: #{forward.7} parent=5 // pred_check_branch
        %686 = sbr.rel (%p684) target = $region44
      $region43: #{forward.7} parent=5 // pred_region
        %s687 = ssub.s32 %s13, 2
        // Predicated region
        $region45: #{forward.7} parent=43 // pred_check
          %p688 = pneg %p164
        $region46: #{forward.7} parent=43 // pred_check_branch
          %690 = sbr.rel (%p688) target = $region48
        $region47: #{forward.7} parent=43 // pred_region
          %s691 = sand.u32 %s149, 1
          %s692 = scalar_lea.sflag [#allocation3], %s691
          %s693 = sand.u32 %s149, 1
          %s694 = smul.addr %s693, 256
          %s695 = scalar_lea.vmem [#allocation2], %s694
          %696 = dma.done %s692, 4096
        $region48: #{forward.7} parent=43 // pred_fallthru
          _
      $region44: #{forward.7} parent=5 // pred_fallthru
        _
    $region6: #{forward.7} parent=1 // loop_footer
      %s17 = sadd.s32 1, %s13
    $region7: #{forward.7} parent=1 // loop_footer_branch
      %12 = sbr.rel target = $region3
    $region8: #{forward.7} parent=1 // loop_exit
      _
    %697 = vsyncpa [#allocation3], 1
    %s698 = scalar_lea.sflag [#allocation3], 1
    %699 = vsyncpa %s698, 1

</llo_original>
